<compile_context>
chip_gen: v7x
topology: tpu7x:2x2x1
jax: 0.10.0
libtpu: 0.0.40
codegen_flags: <defaults>
</compile_context>

<pallas_src>
import functools
import math

import jax
import jax.numpy as jnp
from jax.experimental import pallas as pl
from jax.experimental.pallas import tpu as pltpu


def encoder_layer_kernel(x_ref, wqkv_ref, wo_ref, w1_ref, w2_ref, vec_ref,
                         out_ref, *, head_num, qkv_dim, mxu_dtype,
                         approx_recip):
    eps = 1e-5
    f32 = jnp.float32
    B, N, E = x_ref.shape
    H, D = head_num, qkv_dim
    HD = H * D
    FF = w1_ref.shape[1]
    M = B * N

    # --- packed small vectors (one DMA instead of seven): static lane slices ---
    bo  = vec_ref[:, 0 * E:1 * E]            # (1, E)
    g1  = vec_ref[:, 1 * E:2 * E]
    bt1 = vec_ref[:, 2 * E:3 * E]
    g2  = vec_ref[:, 3 * E:4 * E]
    bt2 = vec_ref[:, 4 * E:5 * E]
    b2  = vec_ref[:, 5 * E:6 * E]
    b1  = vec_ref[:, 6 * E:6 * E + FF]       # (1, FF)

    x = x_ref[...].astype(f32)               # (B, N, E)
    x2 = x.reshape(M, E)                     # residual stream, f32

    # ---- fused QKV projection: ONE MXU push (M, E) x (E, 3*H*D) ----
    # 1/sqrt(D) is already folded into the Wq columns (host-side).
    qkv = jnp.dot(x2.astype(mxu_dtype), wqkv_ref[...],
                  preferred_element_type=f32)            # (M, 3*H*D)

    # ---- per-head SDPA (static H-way loop; lane slices, no transposes) ----
    ctx_parts = []
    for h in range(H):
        qh = qkv[:, h * D:(h + 1) * D].reshape(B, N, D)
        kh = qkv[:, HD + h * D:HD + (h + 1) * D].reshape(B, N, D)
        vh = qkv[:, 2 * HD + h * D:2 * HD + (h + 1) * D].reshape(B, N, D)

        s = jnp.einsum('bqd,bkd->bqk', qh.astype(mxu_dtype),
                       kh.astype(mxu_dtype),
                       preferred_element_type=f32)       # (B, N, N), f32
        s = s - jnp.max(s, axis=-1, keepdims=True)
        p = jnp.exp(s)
        p = p * pl.reciprocal(jnp.sum(p, axis=-1, keepdims=True),
                              approx=approx_recip)
        ch = jnp.einsum('bqk,bkd->bqd', p.astype(mxu_dtype),
                        vh.astype(mxu_dtype),
                        preferred_element_type=f32)      # (B, N, D)
        ctx_parts.append(ch.reshape(M, D))

    # head-major lane concat -> matches PyTorch transpose(1,2).reshape layout
    ctx = jnp.concatenate(ctx_parts, axis=-1)            # (M, H*D)

    # ---- head combine: ONE (M, H*D) x (H*D, E) matmul ----
    mh = jnp.dot(ctx.astype(mxu_dtype), wo_ref[...],
                 preferred_element_type=f32) + bo        # (M, E)

    # ---- Add & InstanceNorm (over seq axis, biased var, per-channel affine) ----
    def add_and_norm(a, b, gamma, beta):
        added = (a + b).reshape(B, N, E)
        mean = jnp.mean(added, axis=1, keepdims=True)
        var = jnp.mean((added - mean) ** 2, axis=1, keepdims=True)
        out = (added - mean) * jax.lax.rsqrt(var + eps)
        out = out * gamma + beta
        return out.reshape(M, E)

    out1 = add_and_norm(x2, mh, g1, bt1)                 # (M, E)

    # ---- FeedForward ----
    h1 = jnp.dot(out1.astype(mxu_dtype), w1_ref[...],
                 preferred_element_type=f32) + b1
    h1 = jnp.maximum(h1, 0.0)
    ff = jnp.dot(h1.astype(mxu_dtype), w2_ref[...],
                 preferred_element_type=f32) + b2

    # ---- Add & InstanceNorm 2, store (M, E) directly (reshape outside) ----
    out_ref[...] = add_and_norm(out1, ff, g2, bt2).astype(out_ref.dtype)


def encoder_layer(x, params, *, head_num, qkv_dim,
                  mxu_dtype=jnp.bfloat16, approx_softmax_recip=True):
    B, N, E = x.shape
    H, D = head_num, qkv_dim
    FF = params["w1"].shape[1]
    # Keep reshapes sublane-aligned / copy-free.
    assert N % 8 == 0 and (B * N) % 8 == 0

    # Host-side layout plumbing (free): fuse QKV weights (with the 1/sqrt(D)
    # scale folded into Wq), cast MXU weights to bf16, and pack all tiny
    # vectors into one input.
    scale = 1.0 / math.sqrt(D)
    wqkv = jnp.concatenate(
        [params["wq"] * scale, params["wk"], params["wv"]],
        axis=1).astype(mxu_dtype)                        # (E, 3*H*D)
    wo = params["wo"].astype(mxu_dtype)                  # (H*D, E)
    w1 = params["w1"].astype(mxu_dtype)                  # (E, FF)
    w2 = params["w2"].astype(mxu_dtype)                  # (FF, E)
    vec = jnp.concatenate(
        [params["bo"], params["g1"], params["bt1"],
         params["g2"], params["bt2"], params["b2"],
         params["b1"]], axis=-1).astype(jnp.float32)     # (1, 6*E + FF)

    kernel = functools.partial(encoder_layer_kernel,
                               head_num=H, qkv_dim=D,
                               mxu_dtype=mxu_dtype,
                               approx_recip=approx_softmax_recip)

    vmem = pl.BlockSpec(memory_space=pltpu.MemorySpace.VMEM)
    out_flat = pl.pallas_call(
        kernel,
        out_shape=jax.ShapeDtypeStruct((B * N, E), x.dtype),
        in_specs=[vmem] * 6,
        out_specs=vmem,
        compiler_params=pltpu.CompilerParams(
            vmem_limit_bytes=32 * 1024 * 1024),
    )(x, wqkv, wo, w1, w2, vec)
    return out_flat.reshape(B, N, E)


def ref_forward(x, p, *, head_num, qkv_dim):
    """Pure-JAX f32 reference mirroring the PyTorch EncoderLayer."""
    B, N, E = x.shape
    eps = 1e-5

    def heads(t):
        return t.reshape(B, N, head_num, qkv_dim).transpose(0, 2, 1, 3)

    q, k, v = heads(x @ p["wq"]), heads(x @ p["wk"]), heads(x @ p["wv"])
    s = jnp.einsum("bhnd,bhmd->bhnm", q, k) / jnp.sqrt(jnp.float32(qkv_dim))
    attn = jax.nn.softmax(s, axis=-1)
    o = jnp.einsum("bhnm,bhmd->bhnd", attn, v)
    o = o.transpose(0, 2, 1, 3).reshape(B, N, head_num * qkv_dim)
    mh = o @ p["wo"] + p["bo"]

    def inorm(a, g, b):
        m = a.mean(axis=1, keepdims=True)
        vv = ((a - m) ** 2).mean(axis=1, keepdims=True)
        return (a - m) / jnp.sqrt(vv + eps) * g + b

    out1 = inorm(x + mh, p["g1"], p["bt1"])
    ff = jnp.maximum(out1 @ p["w1"] + p["b1"], 0.0) @ p["w2"] + p["b2"]
    return inorm(out1 + ff, p["g2"], p["bt2"])


if __name__ == "__main__":
    B, N = 2, 8
    E, H, D, FF = 32, 4, 8, 64   # embedding_dim, head_num, qkv_dim, ff_hidden_dim
    assert H * D == E

    key = jax.random.PRNGKey(0)
    keys = jax.random.split(key, 12)

    params = {
        "wq": 0.1 * jax.random.normal(keys[0], (E, H * D), jnp.float32),
        "wk": 0.1 * jax.random.normal(keys[1], (E, H * D), jnp.float32),
        "wv": 0.1 * jax.random.normal(keys[2], (E, H * D), jnp.float32),
        "wo": 0.1 * jax.random.normal(keys[3], (H * D, E), jnp.float32),
        "bo": 0.1 * jax.random.normal(keys[4], (1, E), jnp.float32),
        "g1": jnp.ones((1, E), jnp.float32),     # InstanceNorm affine weight
        "bt1": jnp.zeros((1, E), jnp.float32),   # InstanceNorm affine bias
        "w1": 0.1 * jax.random.normal(keys[5], (E, FF), jnp.float32),
        "b1": 0.1 * jax.random.normal(keys[6], (1, FF), jnp.float32),
        "w2": 0.1 * jax.random.normal(keys[7], (FF, E), jnp.float32),
        "b2": 0.1 * jax.random.normal(keys[8], (1, E), jnp.float32),
        "g2": jnp.ones((1, E), jnp.float32),
        "bt2": jnp.zeros((1, E), jnp.float32),
    }

    x = jax.random.normal(keys[9], (B, N, E), jnp.float32)
    expected = ref_forward(x, params, head_num=H, qkv_dim=D)

    # 1) Exact-math config (f32 MXU operands, exact reciprocal):
    #    correctness-test path only — never benchmark/ship this config.
    out_exact = encoder_layer(x, params, head_num=H, qkv_dim=D,
                              mxu_dtype=jnp.float32,
                              approx_softmax_recip=False)
    out_exact = jax.block_until_ready(out_exact)
    assert out_exact.shape == (B, N, E)
    err_exact = float(jnp.max(jnp.abs(out_exact - expected)))
    assert jnp.allclose(out_exact, expected, atol=1e-4, rtol=1e-4), err_exact

    # 2) Performance config (bf16 MXU operands + EUP approx reciprocal):
    #    f32 accumulation and f32 elementwise, loosened tolerance.
    out_perf = encoder_layer(x, params, head_num=H, qkv_dim=D)
    out_perf = jax.block_until_ready(out_perf)
    assert out_perf.shape == (B, N, E)
    err_perf = float(jnp.max(jnp.abs(out_perf - expected)))
    assert jnp.allclose(out_perf, expected, atol=5e-2, rtol=5e-2), err_perf

    print("KERNEL_OK")
</pallas_src>

<mosaic_0001>
module attributes {stable_mosaic.version = 11 : i64} {
  func.func @encoder_layer_kernel(%arg0: memref<2x8x32xf32, #tpu.memory_space<vmem>>, %arg1: memref<32x96xf32, #tpu.memory_space<vmem>>, %arg2: memref<32x32xf32, #tpu.memory_space<vmem>>, %arg3: memref<32x64xf32, #tpu.memory_space<vmem>>, %arg4: memref<64x32xf32, #tpu.memory_space<vmem>>, %arg5: memref<1x256xf32, #tpu.memory_space<vmem>>, %arg6: memref<16x32xf32, #tpu.memory_space<vmem>>) attributes {dimension_semantics = [], scalar_prefetch = 0 : i64, scratch_operands = 0 : i64, tpu.core_type = #tpu.core_type<tc>} {
    %c0 = arith.constant 0 : index
    %c0_0 = arith.constant 0 : index
    %0 = vector.load %arg5[%c0, %c0_0] : memref<1x256xf32, #tpu.memory_space<vmem>>, vector<1x32xf32>
    %c0_1 = arith.constant 0 : index
    %c32 = arith.constant 32 : index
    %1 = vector.load %arg5[%c0_1, %c32] : memref<1x256xf32, #tpu.memory_space<vmem>>, vector<1x32xf32>
    %c0_2 = arith.constant 0 : index
    %c64 = arith.constant 64 : index
    %2 = vector.load %arg5[%c0_2, %c64] : memref<1x256xf32, #tpu.memory_space<vmem>>, vector<1x32xf32>
    %c0_3 = arith.constant 0 : index
    %c96 = arith.constant 96 : index
    %3 = vector.load %arg5[%c0_3, %c96] : memref<1x256xf32, #tpu.memory_space<vmem>>, vector<1x32xf32>
    %c0_4 = arith.constant 0 : index
    %c128 = arith.constant 128 : index
    %4 = vector.load %arg5[%c0_4, %c128] : memref<1x256xf32, #tpu.memory_space<vmem>>, vector<1x32xf32>
    %c0_5 = arith.constant 0 : index
    %c160 = arith.constant 160 : index
    %5 = vector.load %arg5[%c0_5, %c160] : memref<1x256xf32, #tpu.memory_space<vmem>>, vector<1x32xf32>
    %c0_6 = arith.constant 0 : index
    %c192 = arith.constant 192 : index
    %6 = vector.load %arg5[%c0_6, %c192] : memref<1x256xf32, #tpu.memory_space<vmem>>, vector<1x64xf32>
    %c0_7 = arith.constant 0 : index
    %c0_8 = arith.constant 0 : index
    %c0_9 = arith.constant 0 : index
    %7 = vector.load %arg0[%c0_7, %c0_8, %c0_9] : memref<2x8x32xf32, #tpu.memory_space<vmem>>, vector<2x8x32xf32>
    %8 = vector.shape_cast %7 : vector<2x8x32xf32> to vector<16x32xf32>
    %c0_10 = arith.constant 0 : index
    %c0_11 = arith.constant 0 : index
    %9 = vector.load %arg1[%c0_10, %c0_11] : memref<32x96xf32, #tpu.memory_space<vmem>>, vector<32x96xf32>
    %cst = arith.constant dense<0.000000e+00> : vector<16x96xf32>
    %10 = tpu.matmul %8, %9, %cst {dimension_numbers = #tpu.dot_dimension_numbers<[1], [0], [0], [1], [0, 0, 1, 1], [], []>} : vector<16x32xf32>, vector<32x96xf32>, vector<16x96xf32> -> vector<16x96xf32>
    %11 = vector.extract_strided_slice %10 {offsets = [0, 0], sizes = [16, 8], strides = [1, 1]} : vector<16x96xf32> to vector<16x8xf32>
    %12 = vector.shape_cast %11 : vector<16x8xf32> to vector<2x8x8xf32>
    %13 = vector.extract_strided_slice %10 {offsets = [0, 32], sizes = [16, 8], strides = [1, 1]} : vector<16x96xf32> to vector<16x8xf32>
    %14 = vector.shape_cast %13 : vector<16x8xf32> to vector<2x8x8xf32>
    %15 = vector.extract_strided_slice %10 {offsets = [0, 64], sizes = [16, 8], strides = [1, 1]} : vector<16x96xf32> to vector<16x8xf32>
    %16 = vector.shape_cast %15 : vector<16x8xf32> to vector<2x8x8xf32>
    "tpu.trace_start"() <{level = 10 : i32, message = "bqd,bkd->bqk"}> : () -> ()
    %cst_12 = arith.constant dense<0.000000e+00> : vector<2x8x8xf32>
    %17 = tpu.matmul %12, %14, %cst_12 {dimension_numbers = #tpu.dot_dimension_numbers<[2], [2], [1], [1], [0, 0, 0, 1, 1, 1], [0], [0]>} : vector<2x8x8xf32>, vector<2x8x8xf32>, vector<2x8x8xf32> -> vector<2x8x8xf32>
    "tpu.trace_stop"() : () -> ()
    %cst_13 = arith.constant dense<0xFF800000> : vector<2x8xf32>
    %18 = vector.multi_reduction <maximumf>, %17, %cst_13 [2] : vector<2x8x8xf32> to vector<2x8xf32>
    %19 = vector.shape_cast %18 : vector<2x8xf32> to vector<2x8x1xf32>
    %20 = vector.broadcast %19 : vector<2x8x1xf32> to vector<2x8x8xf32>
    %21 = arith.subf %17, %20 : vector<2x8x8xf32>
    %22 = math.exp %21 : vector<2x8x8xf32>
    %cst_14 = arith.constant dense<0.000000e+00> : vector<2x8xf32>
    %23 = vector.multi_reduction <add>, %22, %cst_14 [2] : vector<2x8x8xf32> to vector<2x8xf32>
    %24 = vector.shape_cast %23 : vector<2x8xf32> to vector<2x8x1xf32>
    %25 = tpu.reciprocal %24 : vector<2x8x1xf32> -> vector<2x8x1xf32>
    %26 = vector.broadcast %25 : vector<2x8x1xf32> to vector<2x8x8xf32>
    %27 = arith.mulf %22, %26 : vector<2x8x8xf32>
    "tpu.trace_start"() <{level = 10 : i32, message = "bqk,bkd->bqd"}> : () -> ()
    %cst_15 = arith.constant dense<0.000000e+00> : vector<2x8x8xf32>
    %28 = tpu.matmul %27, %16, %cst_15 {dimension_numbers = #tpu.dot_dimension_numbers<[2], [1], [1], [2], [0, 0, 0, 1, 1, 2], [0], [0]>} : vector<2x8x8xf32>, vector<2x8x8xf32>, vector<2x8x8xf32> -> vector<2x8x8xf32>
    "tpu.trace_stop"() : () -> ()
    %29 = vector.shape_cast %28 : vector<2x8x8xf32> to vector<16x8xf32>
    %30 = vector.extract_strided_slice %10 {offsets = [0, 8], sizes = [16, 8], strides = [1, 1]} : vector<16x96xf32> to vector<16x8xf32>
    %31 = vector.shape_cast %30 : vector<16x8xf32> to vector<2x8x8xf32>
    %32 = vector.extract_strided_slice %10 {offsets = [0, 40], sizes = [16, 8], strides = [1, 1]} : vector<16x96xf32> to vector<16x8xf32>
    %33 = vector.shape_cast %32 : vector<16x8xf32> to vector<2x8x8xf32>
    %34 = vector.extract_strided_slice %10 {offsets = [0, 72], sizes = [16, 8], strides = [1, 1]} : vector<16x96xf32> to vector<16x8xf32>
    %35 = vector.shape_cast %34 : vector<16x8xf32> to vector<2x8x8xf32>
    "tpu.trace_start"() <{level = 10 : i32, message = "bqd,bkd->bqk"}> : () -> ()
    %cst_16 = arith.constant dense<0.000000e+00> : vector<2x8x8xf32>
    %36 = tpu.matmul %31, %33, %cst_16 {dimension_numbers = #tpu.dot_dimension_numbers<[2], [2], [1], [1], [0, 0, 0, 1, 1, 1], [0], [0]>} : vector<2x8x8xf32>, vector<2x8x8xf32>, vector<2x8x8xf32> -> vector<2x8x8xf32>
    "tpu.trace_stop"() : () -> ()
    %cst_17 = arith.constant dense<0xFF800000> : vector<2x8xf32>
    %37 = vector.multi_reduction <maximumf>, %36, %cst_17 [2] : vector<2x8x8xf32> to vector<2x8xf32>
    %38 = vector.shape_cast %37 : vector<2x8xf32> to vector<2x8x1xf32>
    %39 = vector.broadcast %38 : vector<2x8x1xf32> to vector<2x8x8xf32>
    %40 = arith.subf %36, %39 : vector<2x8x8xf32>
    %41 = math.exp %40 : vector<2x8x8xf32>
    %cst_18 = arith.constant dense<0.000000e+00> : vector<2x8xf32>
    %42 = vector.multi_reduction <add>, %41, %cst_18 [2] : vector<2x8x8xf32> to vector<2x8xf32>
    %43 = vector.shape_cast %42 : vector<2x8xf32> to vector<2x8x1xf32>
    %44 = tpu.reciprocal %43 : vector<2x8x1xf32> -> vector<2x8x1xf32>
    %45 = vector.broadcast %44 : vector<2x8x1xf32> to vector<2x8x8xf32>
    %46 = arith.mulf %41, %45 : vector<2x8x8xf32>
    "tpu.trace_start"() <{level = 10 : i32, message = "bqk,bkd->bqd"}> : () -> ()
    %cst_19 = arith.constant dense<0.000000e+00> : vector<2x8x8xf32>
    %47 = tpu.matmul %46, %35, %cst_19 {dimension_numbers = #tpu.dot_dimension_numbers<[2], [1], [1], [2], [0, 0, 0, 1, 1, 2], [0], [0]>} : vector<2x8x8xf32>, vector<2x8x8xf32>, vector<2x8x8xf32> -> vector<2x8x8xf32>
    "tpu.trace_stop"() : () -> ()
    %48 = vector.shape_cast %47 : vector<2x8x8xf32> to vector<16x8xf32>
    %49 = vector.extract_strided_slice %10 {offsets = [0, 16], sizes = [16, 8], strides = [1, 1]} : vector<16x96xf32> to vector<16x8xf32>
    %50 = vector.shape_cast %49 : vector<16x8xf32> to vector<2x8x8xf32>
    %51 = vector.extract_strided_slice %10 {offsets = [0, 48], sizes = [16, 8], strides = [1, 1]} : vector<16x96xf32> to vector<16x8xf32>
    %52 = vector.shape_cast %51 : vector<16x8xf32> to vector<2x8x8xf32>
    %53 = vector.extract_strided_slice %10 {offsets = [0, 80], sizes = [16, 8], strides = [1, 1]} : vector<16x96xf32> to vector<16x8xf32>
    %54 = vector.shape_cast %53 : vector<16x8xf32> to vector<2x8x8xf32>
    "tpu.trace_start"() <{level = 10 : i32, message = "bqd,bkd->bqk"}> : () -> ()
    %cst_20 = arith.constant dense<0.000000e+00> : vector<2x8x8xf32>
    %55 = tpu.matmul %50, %52, %cst_20 {dimension_numbers = #tpu.dot_dimension_numbers<[2], [2], [1], [1], [0, 0, 0, 1, 1, 1], [0], [0]>} : vector<2x8x8xf32>, vector<2x8x8xf32>, vector<2x8x8xf32> -> vector<2x8x8xf32>
    "tpu.trace_stop"() : () -> ()
    %cst_21 = arith.constant dense<0xFF800000> : vector<2x8xf32>
    %56 = vector.multi_reduction <maximumf>, %55, %cst_21 [2] : vector<2x8x8xf32> to vector<2x8xf32>
    %57 = vector.shape_cast %56 : vector<2x8xf32> to vector<2x8x1xf32>
    %58 = vector.broadcast %57 : vector<2x8x1xf32> to vector<2x8x8xf32>
    %59 = arith.subf %55, %58 : vector<2x8x8xf32>
    %60 = math.exp %59 : vector<2x8x8xf32>
    %cst_22 = arith.constant dense<0.000000e+00> : vector<2x8xf32>
    %61 = vector.multi_reduction <add>, %60, %cst_22 [2] : vector<2x8x8xf32> to vector<2x8xf32>
    %62 = vector.shape_cast %61 : vector<2x8xf32> to vector<2x8x1xf32>
    %63 = tpu.reciprocal %62 : vector<2x8x1xf32> -> vector<2x8x1xf32>
    %64 = vector.broadcast %63 : vector<2x8x1xf32> to vector<2x8x8xf32>
    %65 = arith.mulf %60, %64 : vector<2x8x8xf32>
    "tpu.trace_start"() <{level = 10 : i32, message = "bqk,bkd->bqd"}> : () -> ()
    %cst_23 = arith.constant dense<0.000000e+00> : vector<2x8x8xf32>
    %66 = tpu.matmul %65, %54, %cst_23 {dimension_numbers = #tpu.dot_dimension_numbers<[2], [1], [1], [2], [0, 0, 0, 1, 1, 2], [0], [0]>} : vector<2x8x8xf32>, vector<2x8x8xf32>, vector<2x8x8xf32> -> vector<2x8x8xf32>
    "tpu.trace_stop"() : () -> ()
    %67 = vector.shape_cast %66 : vector<2x8x8xf32> to vector<16x8xf32>
    %68 = vector.extract_strided_slice %10 {offsets = [0, 24], sizes = [16, 8], strides = [1, 1]} : vector<16x96xf32> to vector<16x8xf32>
    %69 = vector.shape_cast %68 : vector<16x8xf32> to vector<2x8x8xf32>
    %70 = vector.extract_strided_slice %10 {offsets = [0, 56], sizes = [16, 8], strides = [1, 1]} : vector<16x96xf32> to vector<16x8xf32>
    %71 = vector.shape_cast %70 : vector<16x8xf32> to vector<2x8x8xf32>
    %72 = vector.extract_strided_slice %10 {offsets = [0, 88], sizes = [16, 8], strides = [1, 1]} : vector<16x96xf32> to vector<16x8xf32>
    %73 = vector.shape_cast %72 : vector<16x8xf32> to vector<2x8x8xf32>
    "tpu.trace_start"() <{level = 10 : i32, message = "bqd,bkd->bqk"}> : () -> ()
    %cst_24 = arith.constant dense<0.000000e+00> : vector<2x8x8xf32>
    %74 = tpu.matmul %69, %71, %cst_24 {dimension_numbers = #tpu.dot_dimension_numbers<[2], [2], [1], [1], [0, 0, 0, 1, 1, 1], [0], [0]>} : vector<2x8x8xf32>, vector<2x8x8xf32>, vector<2x8x8xf32> -> vector<2x8x8xf32>
    "tpu.trace_stop"() : () -> ()
    %cst_25 = arith.constant dense<0xFF800000> : vector<2x8xf32>
    %75 = vector.multi_reduction <maximumf>, %74, %cst_25 [2] : vector<2x8x8xf32> to vector<2x8xf32>
    %76 = vector.shape_cast %75 : vector<2x8xf32> to vector<2x8x1xf32>
    %77 = vector.broadcast %76 : vector<2x8x1xf32> to vector<2x8x8xf32>
    %78 = arith.subf %74, %77 : vector<2x8x8xf32>
    %79 = math.exp %78 : vector<2x8x8xf32>
    %cst_26 = arith.constant dense<0.000000e+00> : vector<2x8xf32>
    %80 = vector.multi_reduction <add>, %79, %cst_26 [2] : vector<2x8x8xf32> to vector<2x8xf32>
    %81 = vector.shape_cast %80 : vector<2x8xf32> to vector<2x8x1xf32>
    %82 = tpu.reciprocal %81 : vector<2x8x1xf32> -> vector<2x8x1xf32>
    %83 = vector.broadcast %82 : vector<2x8x1xf32> to vector<2x8x8xf32>
    %84 = arith.mulf %79, %83 : vector<2x8x8xf32>
    "tpu.trace_start"() <{level = 10 : i32, message = "bqk,bkd->bqd"}> : () -> ()
    %cst_27 = arith.constant dense<0.000000e+00> : vector<2x8x8xf32>
    %85 = tpu.matmul %84, %73, %cst_27 {dimension_numbers = #tpu.dot_dimension_numbers<[2], [1], [1], [2], [0, 0, 0, 1, 1, 2], [0], [0]>} : vector<2x8x8xf32>, vector<2x8x8xf32>, vector<2x8x8xf32> -> vector<2x8x8xf32>
    "tpu.trace_stop"() : () -> ()
    %86 = vector.shape_cast %85 : vector<2x8x8xf32> to vector<16x8xf32>
    %87 = tpu.concatenate %29, %48, %67, %86 in 1 : vector<16x8xf32>, vector<16x8xf32>, vector<16x8xf32>, vector<16x8xf32> -> vector<16x32xf32>
    %c0_28 = arith.constant 0 : index
    %c0_29 = arith.constant 0 : index
    %88 = vector.load %arg2[%c0_28, %c0_29] : memref<32x32xf32, #tpu.memory_space<vmem>>, vector<32x32xf32>
    %cst_30 = arith.constant dense<0.000000e+00> : vector<16x32xf32>
    %89 = tpu.matmul %87, %88, %cst_30 {dimension_numbers = #tpu.dot_dimension_numbers<[1], [0], [0], [1], [0, 0, 1, 1], [], []>} : vector<16x32xf32>, vector<32x32xf32>, vector<16x32xf32> -> vector<16x32xf32>
    %90 = vector.broadcast %0 : vector<1x32xf32> to vector<16x32xf32>
    %91 = arith.addf %89, %90 : vector<16x32xf32>
    %92 = arith.addf %8, %91 : vector<16x32xf32>
    %93 = vector.shape_cast %92 : vector<16x32xf32> to vector<2x8x32xf32>
    %cst_31 = arith.constant dense<0.000000e+00> : vector<2x32xf32>
    %94 = vector.multi_reduction <add>, %93, %cst_31 [1] : vector<2x8x32xf32> to vector<2x32xf32>
    %95 = vector.shape_cast %94 : vector<2x32xf32> to vector<2x1x32xf32>
    %cst_32 = arith.constant 8.000000e+00 : f32
    %96 = vector.broadcast %cst_32 : f32 to vector<2x1x32xf32>
    %97 = arith.divf %95, %96 : vector<2x1x32xf32>
    %98 = vector.broadcast %97 : vector<2x1x32xf32> to vector<2x8x32xf32>
    %99 = arith.subf %93, %98 : vector<2x8x32xf32>
    %100 = arith.mulf %99, %99 : vector<2x8x32xf32>
    %cst_33 = arith.constant dense<0.000000e+00> : vector<2x32xf32>
    %101 = vector.multi_reduction <add>, %100, %cst_33 [1] : vector<2x8x32xf32> to vector<2x32xf32>
    %102 = vector.shape_cast %101 : vector<2x32xf32> to vector<2x1x32xf32>
    %cst_34 = arith.constant 8.000000e+00 : f32
    %103 = vector.broadcast %cst_34 : f32 to vector<2x1x32xf32>
    %104 = arith.divf %102, %103 : vector<2x1x32xf32>
    %105 = vector.broadcast %97 : vector<2x1x32xf32> to vector<2x8x32xf32>
    %106 = arith.subf %93, %105 : vector<2x8x32xf32>
    %cst_35 = arith.constant 9.99999974E-6 : f32
    %107 = vector.broadcast %cst_35 : f32 to vector<2x1x32xf32>
    %108 = arith.addf %104, %107 : vector<2x1x32xf32>
    %109 = math.rsqrt %108 : vector<2x1x32xf32>
    %110 = vector.broadcast %109 : vector<2x1x32xf32> to vector<2x8x32xf32>
    %111 = arith.mulf %106, %110 : vector<2x8x32xf32>
    %112 = vector.shape_cast %1 : vector<1x32xf32> to vector<1x1x32xf32>
    %113 = vector.broadcast %112 : vector<1x1x32xf32> to vector<2x8x32xf32>
    %114 = arith.mulf %111, %113 : vector<2x8x32xf32>
    %115 = vector.shape_cast %2 : vector<1x32xf32> to vector<1x1x32xf32>
    %116 = vector.broadcast %115 : vector<1x1x32xf32> to vector<2x8x32xf32>
    %117 = arith.addf %114, %116 : vector<2x8x32xf32>
    %118 = vector.shape_cast %117 : vector<2x8x32xf32> to vector<16x32xf32>
    %c0_36 = arith.constant 0 : index
    %c0_37 = arith.constant 0 : index
    %119 = vector.load %arg3[%c0_36, %c0_37] : memref<32x64xf32, #tpu.memory_space<vmem>>, vector<32x64xf32>
    %cst_38 = arith.constant dense<0.000000e+00> : vector<16x64xf32>
    %120 = tpu.matmul %118, %119, %cst_38 {dimension_numbers = #tpu.dot_dimension_numbers<[1], [0], [0], [1], [0, 0, 1, 1], [], []>} : vector<16x32xf32>, vector<32x64xf32>, vector<16x64xf32> -> vector<16x64xf32>
    %121 = vector.broadcast %6 : vector<1x64xf32> to vector<16x64xf32>
    %122 = arith.addf %120, %121 : vector<16x64xf32>
    %cst_39 = arith.constant 0.000000e+00 : f32
    %123 = vector.broadcast %cst_39 : f32 to vector<16x64xf32>
    %124 = arith.maximumf %122, %123 : vector<16x64xf32>
    %c0_40 = arith.constant 0 : index
    %c0_41 = arith.constant 0 : index
    %125 = vector.load %arg4[%c0_40, %c0_41] : memref<64x32xf32, #tpu.memory_space<vmem>>, vector<64x32xf32>
    %cst_42 = arith.constant dense<0.000000e+00> : vector<16x32xf32>
    %126 = tpu.matmul %124, %125, %cst_42 {dimension_numbers = #tpu.dot_dimension_numbers<[1], [0], [0], [1], [0, 0, 1, 1], [], []>} : vector<16x64xf32>, vector<64x32xf32>, vector<16x32xf32> -> vector<16x32xf32>
    %127 = vector.broadcast %5 : vector<1x32xf32> to vector<16x32xf32>
    %128 = arith.addf %126, %127 : vector<16x32xf32>
    %129 = arith.addf %118, %128 : vector<16x32xf32>
    %130 = vector.shape_cast %129 : vector<16x32xf32> to vector<2x8x32xf32>
    %cst_43 = arith.constant dense<0.000000e+00> : vector<2x32xf32>
    %131 = vector.multi_reduction <add>, %130, %cst_43 [1] : vector<2x8x32xf32> to vector<2x32xf32>
    %132 = vector.shape_cast %131 : vector<2x32xf32> to vector<2x1x32xf32>
    %cst_44 = arith.constant 8.000000e+00 : f32
    %133 = vector.broadcast %cst_44 : f32 to vector<2x1x32xf32>
    %134 = arith.divf %132, %133 : vector<2x1x32xf32>
    %135 = vector.broadcast %134 : vector<2x1x32xf32> to vector<2x8x32xf32>
    %136 = arith.subf %130, %135 : vector<2x8x32xf32>
    %137 = arith.mulf %136, %136 : vector<2x8x32xf32>
    %cst_45 = arith.constant dense<0.000000e+00> : vector<2x32xf32>
    %138 = vector.multi_reduction <add>, %137, %cst_45 [1] : vector<2x8x32xf32> to vector<2x32xf32>
    %139 = vector.shape_cast %138 : vector<2x32xf32> to vector<2x1x32xf32>
    %cst_46 = arith.constant 8.000000e+00 : f32
    %140 = vector.broadcast %cst_46 : f32 to vector<2x1x32xf32>
    %141 = arith.divf %139, %140 : vector<2x1x32xf32>
    %142 = vector.broadcast %134 : vector<2x1x32xf32> to vector<2x8x32xf32>
    %143 = arith.subf %130, %142 : vector<2x8x32xf32>
    %cst_47 = arith.constant 9.99999974E-6 : f32
    %144 = vector.broadcast %cst_47 : f32 to vector<2x1x32xf32>
    %145 = arith.addf %141, %144 : vector<2x1x32xf32>
    %146 = math.rsqrt %145 : vector<2x1x32xf32>
    %147 = vector.broadcast %146 : vector<2x1x32xf32> to vector<2x8x32xf32>
    %148 = arith.mulf %143, %147 : vector<2x8x32xf32>
    %149 = vector.shape_cast %3 : vector<1x32xf32> to vector<1x1x32xf32>
    %150 = vector.broadcast %149 : vector<1x1x32xf32> to vector<2x8x32xf32>
    %151 = arith.mulf %148, %150 : vector<2x8x32xf32>
    %152 = vector.shape_cast %4 : vector<1x32xf32> to vector<1x1x32xf32>
    %153 = vector.broadcast %152 : vector<1x1x32xf32> to vector<2x8x32xf32>
    %154 = arith.addf %151, %153 : vector<2x8x32xf32>
    %155 = vector.shape_cast %154 : vector<2x8x32xf32> to vector<16x32xf32>
    %c0_48 = arith.constant 0 : index
    %c0_49 = arith.constant 0 : index
    %156 = vector.load %arg6[%c0_48, %c0_49] : memref<16x32xf32, #tpu.memory_space<vmem>>, vector<16x32xf32>
    tpu.vector_store %arg6[%c0_48, %c0_49], %155 {strides = array<i32>} : memref<16x32xf32, #tpu.memory_space<vmem>>, vector<16x32xf32>,
    return
  }
}

</mosaic_0001>

<llo_original>
// kernel: tpu_custom_call.1
$region0: #{tpu_custom_call.1}
  #allocation0 [shape = 'u32[]', space=smem, size = 0x4, offset = 0x4, fixed_abs, tag = 'smem constant byte address 0x4 - core index']
  #allocation1 [shape = 'u32[144,128]{1,0:T(1,128)}', space=vmem, size = 0x12000, scoped, tag = 'internal scratch']
  %s0 = inlined_call_operand.hbm [shape: f32[2,8,32], index: 0, kind: input, shape index: {}]
  %s1 = inlined_call_operand.vmem [shape: f32[32,96], index: 1, kind: input, shape index: {}]
  %s2 = inlined_call_operand.vmem [shape: f32[32,32], index: 2, kind: input, shape index: {}]
  %s3 = inlined_call_operand.vmem [shape: f32[32,64], index: 3, kind: input, shape index: {}]
  %s4 = inlined_call_operand.vmem [shape: f32[64,32], index: 4, kind: input, shape index: {}]
  %s5 = inlined_call_operand.vmem [shape: f32[1,256], index: 5, kind: input, shape index: {}]
  %s6 = inlined_call_operand.hbm [shape: f32[16,32], index: 6, kind: output, shape index: {}]
  %s7 = sld [smem:[#allocation0]]
  $region38: #{tpu_custom_call.1} parent=0
    _
  %s9 = ssub.s32 1, %s7
  %s10 = scalar_select 0, %s9, %s7
  $region1: #{tpu_custom_call.1} parent=0
    #allocation2 [shape = 'u8[8192]{0}', space=vmem, size = 0x2000, scoped, tag = 'input window, operand 0, single buffered']
    #allocation3 [shape = 's32[1]{0}', space=sflag, size = 0x4, scoped, tag = 'scoped memory for tpu_custom_call.1']
    #allocation4 [shape = 's32[1]{0}', space=sflag, size = 0x4, scoped, tag = 'scoped memory for tpu_custom_call.1']
    #allocation5 [shape = 'u8[8192]{0}', space=vmem, size = 0x2000, scoped, tag = 'output window, operand 0, single buffered']
    %11 = vsyncpa [#allocation3], 0
    %12 = vsyncpa [#allocation4], 0
    // Predicated region
    $region2: #{tpu_custom_call.1} parent=1 // pred_check
      _
    $region3: #{tpu_custom_call.1} parent=1 // pred_check_branch
      %14 = sbr.rel (0) target = $region5
    $region4: #{tpu_custom_call.1} parent=1 // pred_region
      %s16 = ssub.s32 256, 256
      %17 = vsyncadd [#allocation3], %s16
      %s18 = sshll.u32 [#allocation2], 4
      %s19 = int_to_ptr.vmem [resolvable:$true] %s18
      %24 = dma.hbm_to_vmem [thread:$0]  %s0, 256, %s19, [#allocation3], 128, 128, 8
    $region5: #{tpu_custom_call.1} parent=1 // pred_fallthru
      _
    // Predicated region
    $region6: #{tpu_custom_call.1} parent=1 // pred_check
      _
    $region7: #{tpu_custom_call.1} parent=1 // pred_check_branch
      %26 = sbr.rel (0) target = $region9
    $region8: #{tpu_custom_call.1} parent=1 // pred_region
      _
    $region9: #{tpu_custom_call.1} parent=1 // pred_fallthru
      _
    // Predicated region
    $region10: #{tpu_custom_call.1} parent=1 // pred_check
      _
    $region11: #{tpu_custom_call.1} parent=1 // pred_check_branch
      %28 = sbr.rel (0) target = $region13
    $region12: #{tpu_custom_call.1} parent=1 // pred_region
      _
    $region13: #{tpu_custom_call.1} parent=1 // pred_fallthru
      _
    // Predicated region
    $region14: #{tpu_custom_call.1} parent=1 // pred_check
      _
    $region15: #{tpu_custom_call.1} parent=1 // pred_check_branch
      %30 = sbr.rel (0) target = $region17
    $region16: #{tpu_custom_call.1} parent=1 // pred_region
      _
    $region17: #{tpu_custom_call.1} parent=1 // pred_fallthru
      _
    // Predicated region
    $region18: #{tpu_custom_call.1} parent=1 // pred_check
      _
    $region19: #{tpu_custom_call.1} parent=1 // pred_check_branch
      %32 = sbr.rel (0) target = $region21
    $region20: #{tpu_custom_call.1} parent=1 // pred_region
      _
    $region21: #{tpu_custom_call.1} parent=1 // pred_fallthru
      _
    // Predicated region
    $region22: #{tpu_custom_call.1} parent=1 // pred_check
      _
    $region23: #{tpu_custom_call.1} parent=1 // pred_check_branch
      %34 = sbr.rel (0) target = $region25
    $region24: #{tpu_custom_call.1} parent=1 // pred_region
      _
    $region25: #{tpu_custom_call.1} parent=1 // pred_fallthru
      _
    // Predicated region
    $region26: #{tpu_custom_call.1} parent=1 // pred_check
      _
    $region27: #{tpu_custom_call.1} parent=1 // pred_check_branch
      %36 = sbr.rel (0) target = $region29
    $region28: #{tpu_custom_call.1} parent=1 // pred_region
      %37 = dma.done [#allocation3], 256
    $region29: #{tpu_custom_call.1} parent=1 // pred_fallthru
      _
    %v38 = vld [vmem:[%s5] sm:$0x1]
    %v39 = vld [vmem:[%s5 + $0x1] sm:$0x1]
    %v40 = vld [vmem:[#allocation2] sm:$0xff]
    %v41 = vld [vmem:[#allocation2 + $0x8] sm:$0xff]
    %v42 = vld [vmem:[%s1] sm:$0xff]
    %v43 = vld [vmem:[%s1 + $0x8] sm:$0xff]
    %v44 = vld [vmem:[%s1 + $0x10] sm:$0xff]
    %v45 = vld [vmem:[%s1 + $0x18] sm:$0xff]
    %vm46 = vcmask 261120
    %v48 = vsel %vm46, %v40, 0
    %v51 = vsel %vm46, %v41, 0
    %53 = vmatprep.subr.mxu0 0.0
    %54 = vmatpush1.msra.mxu0 %v42
    %55 = vmatprep.subr.mxu0 0.0
    %56 = vmatpush1.msra.mxu0 %v43
    %57 = vmatprep.subr.mxu0 0.0
    %58 = vmatpush1.msra.mxu0 %v44
    %59 = vmatprep.subr.mxu0 0.0
    %60 = vmatpush1.msra.mxu0 %v45
    %61 = vmatprep.subr.mxu0 0.0
    %62 = vmatpush1.msra.mxu0 0.0
    %63 = vmatprep.subr.mxu0 0.0
    %64 = vmatpush1.msra.mxu0 0.0
    %65 = vmatprep.subr.mxu0 0.0
    %66 = vmatpush1.msra.mxu0 0.0
    %67 = vmatprep.subr.mxu0 0.0
    %68 = vmatpush1.msra.mxu0 0.0
    %69 = vmatprep.subr.mxu0 0.0
    %70 = vmatpush1.msra.mxu0 0.0
    %71 = vmatprep.subr.mxu0 0.0
    %72 = vmatpush1.msra.mxu0 0.0
    %73 = vmatprep.subr.mxu0 0.0
    %74 = vmatpush1.msra.mxu0 0.0
    %75 = vmatprep.subr.mxu0 0.0
    %76 = vmatpush1.msra.mxu0 0.0
    %77 = vmatprep.subr.mxu0 0.0
    %78 = vmatpush1.msra.mxu0 0.0
    %79 = vmatprep.subr.mxu0 0.0
    %80 = vmatpush1.msra.mxu0 0.0
    %81 = vmatprep.subr.mxu0 0.0
    %82 = vmatpush1.msra.mxu0 0.0
    %83 = vmatprep.subr.mxu0 0.0
    %84 = vmatpush1.msra.mxu0 0.0
    %85 = vmatprep.subr.mxu0 0.0
    %86 = vmatpush1.msra.mxu0 0.0
    %87 = vmatprep.subr.mxu0 0.0
    %88 = vmatpush1.msra.mxu0 0.0
    %89 = vmatprep.subr.mxu0 0.0
    %90 = vmatpush1.msra.mxu0 0.0
    %91 = vmatprep.subr.mxu0 0.0
    %92 = vmatpush1.msra.mxu0 0.0
    %93 = vmatprep.subr.mxu0 0.0
    %94 = vmatpush1.msra.mxu0 0.0
    %95 = vmatprep.subr.mxu0 0.0
    %96 = vmatpush1.msra.mxu0 0.0
    %97 = vmatprep.subr.mxu0 0.0
    %98 = vmatpush1.msra.mxu0 0.0
    %99 = vmatprep.subr.mxu0 0.0
    %100 = vmatpush1.msra.mxu0 0.0
    %101 = vmatprep.subr.mxu0 0.0
    %102 = vmatpush1.msra.mxu0 0.0
    %103 = vmatprep.subr.mxu0 0.0
    %104 = vmatpush1.msra.mxu0 0.0
    %105 = vmatprep.subr.mxu0 0.0
    %106 = vmatpush1.msra.mxu0 0.0
    %107 = vmatprep.subr.mxu0 0.0
    %108 = vmatpush1.msra.mxu0 0.0
    %109 = vmatprep.subr.mxu0 0.0
    %110 = vmatpush1.msra.mxu0 0.0
    %111 = vmatprep.subr.mxu0 0.0
    %112 = vmatpush1.msra.mxu0 0.0
    %113 = vmatprep.subr.mxu0 0.0
    %114 = vmatpush1.msra.mxu0 0.0
    %115 = vmatprep.subr.mxu0 0.0
    %116 = vmatpush1.msra.mxu0 0.0
    %117 = vmatprep.mubr.f32.mxu0 0.0
    %118 = vmatmul.mubr.f32.gmra.mrb[0].mxu0 %v48
    %v119 = vpop.f32.mrb[0].mxu0
    %v120 = vadd.f32 0.0, %v119
    %v121 = vpop.f32.mrb[0].mxu0
    %122 = vmatprep.mubr.f32.mxu0 0.0
    %123 = vmatmul.mubr.f32.gmra.mrb[0].mxu0 %v51
    %v124 = vpop.f32.mrb[0].mxu0
    %v125 = vadd.f32 0.0, %v124
    %v126 = vpop.f32.mrb[0].mxu0
    %127 = vdwg.mxu0
    %129 = vrot.lane.b32.xlu0 %v120, 96
    %v130 = vpop.permute.xlu0 %129
    %vm131 = vcmask 64512
    %v132 = vsel %vm131, %v120, 0
    %v134 = vsel %vm131, %v130, 0
    %136 = vmatprep.subr.mxu0 0.0
    %137 = vmatpush1.xpose.msra.mxu0 %v134
    %138 = vmatprep.subr.mxu0 0.0
    %139 = vmatpush1.xpose.msra.mxu0 0.0
    %140 = vmatprep.subr.mxu0 0.0
    %141 = vmatpush1.xpose.msra.mxu0 0.0
    %142 = vmatprep.subr.mxu0 0.0
    %143 = vmatpush1.xpose.msra.mxu0 0.0
    %144 = vmatprep.subr.mxu0 0.0
    %145 = vmatpush1.xpose.msra.mxu0 0.0
    %146 = vmatprep.subr.mxu0 0.0
    %147 = vmatpush1.xpose.msra.mxu0 0.0
    %148 = vmatprep.subr.mxu0 0.0
    %149 = vmatpush1.xpose.msra.mxu0 0.0
    %150 = vmatprep.subr.mxu0 0.0
    %151 = vmatpush1.xpose.msra.mxu0 0.0
    %152 = vmatprep.subr.mxu0 0.0
    %153 = vmatpush1.xpose.msra.mxu0 0.0
    %154 = vmatprep.subr.mxu0 0.0
    %155 = vmatpush1.xpose.msra.mxu0 0.0
    %156 = vmatprep.subr.mxu0 0.0
    %157 = vmatpush1.xpose.msra.mxu0 0.0
    %158 = vmatprep.subr.mxu0 0.0
    %159 = vmatpush1.xpose.msra.mxu0 0.0
    %160 = vmatprep.subr.mxu0 0.0
    %161 = vmatpush1.xpose.msra.mxu0 0.0
    %162 = vmatprep.subr.mxu0 0.0
    %163 = vmatpush1.xpose.msra.mxu0 0.0
    %164 = vmatprep.subr.mxu0 0.0
    %165 = vmatpush1.xpose.msra.mxu0 0.0
    %166 = vmatprep.subr.mxu0 0.0
    %167 = vmatpush1.xpose.msra.mxu0 0.0
    %168 = vmatprep.subr.mxu0 0.0
    %169 = vmatpush1.xpose.msra.mxu0 0.0
    %170 = vmatprep.subr.mxu0 0.0
    %171 = vmatpush1.xpose.msra.mxu0 0.0
    %172 = vmatprep.subr.mxu0 0.0
    %173 = vmatpush1.xpose.msra.mxu0 0.0
    %174 = vmatprep.subr.mxu0 0.0
    %175 = vmatpush1.xpose.msra.mxu0 0.0
    %176 = vmatprep.subr.mxu0 0.0
    %177 = vmatpush1.xpose.msra.mxu0 0.0
    %178 = vmatprep.subr.mxu0 0.0
    %179 = vmatpush1.xpose.msra.mxu0 0.0
    %180 = vmatprep.subr.mxu0 0.0
    %181 = vmatpush1.xpose.msra.mxu0 0.0
    %182 = vmatprep.subr.mxu0 0.0
    %183 = vmatpush1.xpose.msra.mxu0 0.0
    %184 = vmatprep.subr.mxu0 0.0
    %185 = vmatpush1.xpose.msra.mxu0 0.0
    %186 = vmatprep.subr.mxu0 0.0
    %187 = vmatpush1.xpose.msra.mxu0 0.0
    %188 = vmatprep.subr.mxu0 0.0
    %189 = vmatpush1.xpose.msra.mxu0 0.0
    %190 = vmatprep.subr.mxu0 0.0
    %191 = vmatpush1.xpose.msra.mxu0 0.0
    %192 = vmatprep.subr.mxu0 0.0
    %193 = vmatpush1.xpose.msra.mxu0 0.0
    %194 = vmatprep.subr.mxu0 0.0
    %195 = vmatpush1.xpose.msra.mxu0 0.0
    %196 = vmatprep.subr.mxu0 0.0
    %197 = vmatpush1.xpose.msra.mxu0 0.0
    %198 = vmatprep.subr.mxu0 0.0
    %199 = vmatpush1.xpose.msra.mxu0 0.0
    %200 = vmatprep.mubr.f32.mxu0 0.0
    %201 = vmatmul.mubr.f32.gmra.mrb[0].mxu0 %v132
    %v202 = vpop.f32.mrb[0].mxu0
    %v203 = vadd.f32 0.0, %v202
    %v204 = vpop.f32.mrb[0].mxu0
    %205 = vdwg.mxu0
    %207 = vrot.lane.b32.xlu0 %v125, 96
    %v208 = vpop.permute.xlu0 %207
    %v209 = vsel %vm131, %v125, 0
    %v211 = vsel %vm131, %v208, 0
    %213 = vmatprep.subr.mxu0 0.0
    %214 = vmatpush1.xpose.msra.mxu0 %v211
    %215 = vmatprep.subr.mxu0 0.0
    %216 = vmatpush1.xpose.msra.mxu0 0.0
    %217 = vmatprep.subr.mxu0 0.0
    %218 = vmatpush1.xpose.msra.mxu0 0.0
    %219 = vmatprep.subr.mxu0 0.0
    %220 = vmatpush1.xpose.msra.mxu0 0.0
    %221 = vmatprep.subr.mxu0 0.0
    %222 = vmatpush1.xpose.msra.mxu0 0.0
    %223 = vmatprep.subr.mxu0 0.0
    %224 = vmatpush1.xpose.msra.mxu0 0.0
    %225 = vmatprep.subr.mxu0 0.0
    %226 = vmatpush1.xpose.msra.mxu0 0.0
    %227 = vmatprep.subr.mxu0 0.0
    %228 = vmatpush1.xpose.msra.mxu0 0.0
    %229 = vmatprep.subr.mxu0 0.0
    %230 = vmatpush1.xpose.msra.mxu0 0.0
    %231 = vmatprep.subr.mxu0 0.0
    %232 = vmatpush1.xpose.msra.mxu0 0.0
    %233 = vmatprep.subr.mxu0 0.0
    %234 = vmatpush1.xpose.msra.mxu0 0.0
    %235 = vmatprep.subr.mxu0 0.0
    %236 = vmatpush1.xpose.msra.mxu0 0.0
    %237 = vmatprep.subr.mxu0 0.0
    %238 = vmatpush1.xpose.msra.mxu0 0.0
    %239 = vmatprep.subr.mxu0 0.0
    %240 = vmatpush1.xpose.msra.mxu0 0.0
    %241 = vmatprep.subr.mxu0 0.0
    %242 = vmatpush1.xpose.msra.mxu0 0.0
    %243 = vmatprep.subr.mxu0 0.0
    %244 = vmatpush1.xpose.msra.mxu0 0.0
    %245 = vmatprep.subr.mxu0 0.0
    %246 = vmatpush1.xpose.msra.mxu0 0.0
    %247 = vmatprep.subr.mxu0 0.0
    %248 = vmatpush1.xpose.msra.mxu0 0.0
    %249 = vmatprep.subr.mxu0 0.0
    %250 = vmatpush1.xpose.msra.mxu0 0.0
    %251 = vmatprep.subr.mxu0 0.0
    %252 = vmatpush1.xpose.msra.mxu0 0.0
    %253 = vmatprep.subr.mxu0 0.0
    %254 = vmatpush1.xpose.msra.mxu0 0.0
    %255 = vmatprep.subr.mxu0 0.0
    %256 = vmatpush1.xpose.msra.mxu0 0.0
    %257 = vmatprep.subr.mxu0 0.0
    %258 = vmatpush1.xpose.msra.mxu0 0.0
    %259 = vmatprep.subr.mxu0 0.0
    %260 = vmatpush1.xpose.msra.mxu0 0.0
    %261 = vmatprep.subr.mxu0 0.0
    %262 = vmatpush1.xpose.msra.mxu0 0.0
    %263 = vmatprep.subr.mxu0 0.0
    %264 = vmatpush1.xpose.msra.mxu0 0.0
    %265 = vmatprep.subr.mxu0 0.0
    %266 = vmatpush1.xpose.msra.mxu0 0.0
    %267 = vmatprep.subr.mxu0 0.0
    %268 = vmatpush1.xpose.msra.mxu0 0.0
    %269 = vmatprep.subr.mxu0 0.0
    %270 = vmatpush1.xpose.msra.mxu0 0.0
    %271 = vmatprep.subr.mxu0 0.0
    %272 = vmatpush1.xpose.msra.mxu0 0.0
    %273 = vmatprep.subr.mxu0 0.0
    %274 = vmatpush1.xpose.msra.mxu0 0.0
    %275 = vmatprep.subr.mxu0 0.0
    %276 = vmatpush1.xpose.msra.mxu0 0.0
    %277 = vmatprep.mubr.f32.mxu0 0.0
    %278 = vmatmul.mubr.f32.gmra.mrb[0].mxu0 %v209
    %v279 = vpop.f32.mrb[0].mxu0
    %v280 = vadd.f32 0.0, %v279
    %v281 = vpop.f32.mrb[0].mxu0
    %282 = vdwg.mxu0
    %v283 = vsel %vm131, %v203, -inf
    %284 = vmax.xlane.f32.xlu0 %v283
    %v285 = vpop.xlane.xlu0 %284
    %v286 = vsel %vm131, %v280, -inf
    %287 = vmax.xlane.f32.xlu0 %v286
    %v288 = vpop.xlane.xlu0 %287
    %v289 = vsub.f32 %v203, %v285
    %v290 = vsub.f32 %v280, %v288
    %v291 = vmul.f32 %v289, 1.442695
    %v292 = vpow.pop %v291
    %v293 = vmul.f32 %v290, 1.442695
    %v294 = vpow.pop %v293
    %v295 = vsel %vm131, %v292, 0.0
    %296 = vadd.xlane.f32.xlu0 %v295
    %v297 = vpop.xlane.xlu0 %296
    %v298 = vsel %vm131, %v294, 0.0
    %299 = vadd.xlane.f32.xlu0 %v298
    %v300 = vpop.xlane.xlu0 %299
    %v301 = vrcp.pop %v297
    %v302 = vrcp.pop %v300
    %v303 = vmul.f32 %v292, %v301
    %v304 = vmul.f32 %v294, %v302
    %305 = vrot.lane.b32.xlu0 %v120, 64
    %v306 = vpop.permute.xlu0 %305
    %v309 = vsel %vm131, %v303, 0
    %311 = vmatprep.subr.mxu0 0.0
    %312 = vmatpush1.msra.mxu0 %v306
    %313 = vmatprep.subr.mxu0 0.0
    %314 = vmatpush1.msra.mxu0 0.0
    %315 = vmatprep.subr.mxu0 0.0
    %316 = vmatpush1.msra.mxu0 0.0
    %317 = vmatprep.subr.mxu0 0.0
    %318 = vmatpush1.msra.mxu0 0.0
    %319 = vmatprep.subr.mxu0 0.0
    %320 = vmatpush1.msra.mxu0 0.0
    %321 = vmatprep.subr.mxu0 0.0
    %322 = vmatpush1.msra.mxu0 0.0
    %323 = vmatprep.subr.mxu0 0.0
    %324 = vmatpush1.msra.mxu0 0.0
    %325 = vmatprep.subr.mxu0 0.0
    %326 = vmatpush1.msra.mxu0 0.0
    %327 = vmatprep.subr.mxu0 0.0
    %328 = vmatpush1.msra.mxu0 0.0
    %329 = vmatprep.subr.mxu0 0.0
    %330 = vmatpush1.msra.mxu0 0.0
    %331 = vmatprep.subr.mxu0 0.0
    %332 = vmatpush1.msra.mxu0 0.0
    %333 = vmatprep.subr.mxu0 0.0
    %334 = vmatpush1.msra.mxu0 0.0
    %335 = vmatprep.subr.mxu0 0.0
    %336 = vmatpush1.msra.mxu0 0.0
    %337 = vmatprep.subr.mxu0 0.0
    %338 = vmatpush1.msra.mxu0 0.0
    %339 = vmatprep.subr.mxu0 0.0
    %340 = vmatpush1.msra.mxu0 0.0
    %341 = vmatprep.subr.mxu0 0.0
    %342 = vmatpush1.msra.mxu0 0.0
    %343 = vmatprep.subr.mxu0 0.0
    %344 = vmatpush1.msra.mxu0 0.0
    %345 = vmatprep.subr.mxu0 0.0
    %346 = vmatpush1.msra.mxu0 0.0
    %347 = vmatprep.subr.mxu0 0.0
    %348 = vmatpush1.msra.mxu0 0.0
    %349 = vmatprep.subr.mxu0 0.0
    %350 = vmatpush1.msra.mxu0 0.0
    %351 = vmatprep.subr.mxu0 0.0
    %352 = vmatpush1.msra.mxu0 0.0
    %353 = vmatprep.subr.mxu0 0.0
    %354 = vmatpush1.msra.mxu0 0.0
    %355 = vmatprep.subr.mxu0 0.0
    %356 = vmatpush1.msra.mxu0 0.0
    %357 = vmatprep.subr.mxu0 0.0
    %358 = vmatpush1.msra.mxu0 0.0
    %359 = vmatprep.subr.mxu0 0.0
    %360 = vmatpush1.msra.mxu0 0.0
    %361 = vmatprep.subr.mxu0 0.0
    %362 = vmatpush1.msra.mxu0 0.0
    %363 = vmatprep.subr.mxu0 0.0
    %364 = vmatpush1.msra.mxu0 0.0
    %365 = vmatprep.subr.mxu0 0.0
    %366 = vmatpush1.msra.mxu0 0.0
    %367 = vmatprep.subr.mxu0 0.0
    %368 = vmatpush1.msra.mxu0 0.0
    %369 = vmatprep.subr.mxu0 0.0
    %370 = vmatpush1.msra.mxu0 0.0
    %371 = vmatprep.subr.mxu0 0.0
    %372 = vmatpush1.msra.mxu0 0.0
    %373 = vmatprep.subr.mxu0 0.0
    %374 = vmatpush1.msra.mxu0 0.0
    %375 = vmatprep.mubr.f32.mxu0 0.0
    %376 = vmatmul.mubr.f32.gmra.mrb[0].mxu0 %v309
    %v377 = vpop.f32.mrb[0].mxu0
    %v378 = vadd.f32 0.0, %v377
    %v379 = vpop.f32.mrb[0].mxu0
    %380 = vdwg.mxu0
    %381 = vrot.lane.b32.xlu0 %v125, 64
    %v382 = vpop.permute.xlu0 %381
    %v385 = vsel %vm131, %v304, 0
    %387 = vmatprep.subr.mxu0 0.0
    %388 = vmatpush1.msra.mxu0 %v382
    %389 = vmatprep.subr.mxu0 0.0
    %390 = vmatpush1.msra.mxu0 0.0
    %391 = vmatprep.subr.mxu0 0.0
    %392 = vmatpush1.msra.mxu0 0.0
    %393 = vmatprep.subr.mxu0 0.0
    %394 = vmatpush1.msra.mxu0 0.0
    %395 = vmatprep.subr.mxu0 0.0
    %396 = vmatpush1.msra.mxu0 0.0
    %397 = vmatprep.subr.mxu0 0.0
    %398 = vmatpush1.msra.mxu0 0.0
    %399 = vmatprep.subr.mxu0 0.0
    %400 = vmatpush1.msra.mxu0 0.0
    %401 = vmatprep.subr.mxu0 0.0
    %402 = vmatpush1.msra.mxu0 0.0
    %403 = vmatprep.subr.mxu0 0.0
    %404 = vmatpush1.msra.mxu0 0.0
    %405 = vmatprep.subr.mxu0 0.0
    %406 = vmatpush1.msra.mxu0 0.0
    %407 = vmatprep.subr.mxu0 0.0
    %408 = vmatpush1.msra.mxu0 0.0
    %409 = vmatprep.subr.mxu0 0.0
    %410 = vmatpush1.msra.mxu0 0.0
    %411 = vmatprep.subr.mxu0 0.0
    %412 = vmatpush1.msra.mxu0 0.0
    %413 = vmatprep.subr.mxu0 0.0
    %414 = vmatpush1.msra.mxu0 0.0
    %415 = vmatprep.subr.mxu0 0.0
    %416 = vmatpush1.msra.mxu0 0.0
    %417 = vmatprep.subr.mxu0 0.0
    %418 = vmatpush1.msra.mxu0 0.0
    %419 = vmatprep.subr.mxu0 0.0
    %420 = vmatpush1.msra.mxu0 0.0
    %421 = vmatprep.subr.mxu0 0.0
    %422 = vmatpush1.msra.mxu0 0.0
    %423 = vmatprep.subr.mxu0 0.0
    %424 = vmatpush1.msra.mxu0 0.0
    %425 = vmatprep.subr.mxu0 0.0
    %426 = vmatpush1.msra.mxu0 0.0
    %427 = vmatprep.subr.mxu0 0.0
    %428 = vmatpush1.msra.mxu0 0.0
    %429 = vmatprep.subr.mxu0 0.0
    %430 = vmatpush1.msra.mxu0 0.0
    %431 = vmatprep.subr.mxu0 0.0
    %432 = vmatpush1.msra.mxu0 0.0
    %433 = vmatprep.subr.mxu0 0.0
    %434 = vmatpush1.msra.mxu0 0.0
    %435 = vmatprep.subr.mxu0 0.0
    %436 = vmatpush1.msra.mxu0 0.0
    %437 = vmatprep.subr.mxu0 0.0
    %438 = vmatpush1.msra.mxu0 0.0
    %439 = vmatprep.subr.mxu0 0.0
    %440 = vmatpush1.msra.mxu0 0.0
    %441 = vmatprep.subr.mxu0 0.0
    %442 = vmatpush1.msra.mxu0 0.0
    %443 = vmatprep.subr.mxu0 0.0
    %444 = vmatpush1.msra.mxu0 0.0
    %445 = vmatprep.subr.mxu0 0.0
    %446 = vmatpush1.msra.mxu0 0.0
    %447 = vmatprep.subr.mxu0 0.0
    %448 = vmatpush1.msra.mxu0 0.0
    %449 = vmatprep.subr.mxu0 0.0
    %450 = vmatpush1.msra.mxu0 0.0
    %451 = vmatprep.mubr.f32.mxu0 0.0
    %452 = vmatmul.mubr.f32.gmra.mrb[0].mxu0 %v385
    %v453 = vpop.f32.mrb[0].mxu0
    %v454 = vadd.f32 0.0, %v453
    %v455 = vpop.f32.mrb[0].mxu0
    %456 = vdwg.mxu0
    %457 = vrot.lane.b32.xlu0 %v120, 120
    %v458 = vpop.permute.xlu0 %457
    %459 = vrot.lane.b32.xlu0 %v120, 88
    %v460 = vpop.permute.xlu0 %459
    %v461 = vsel %vm131, %v458, 0
    %v463 = vsel %vm131, %v460, 0
    %465 = vmatprep.subr.mxu0 0.0
    %466 = vmatpush1.xpose.msra.mxu0 %v463
    %467 = vmatprep.subr.mxu0 0.0
    %468 = vmatpush1.xpose.msra.mxu0 0.0
    %469 = vmatprep.subr.mxu0 0.0
    %470 = vmatpush1.xpose.msra.mxu0 0.0
    %471 = vmatprep.subr.mxu0 0.0
    %472 = vmatpush1.xpose.msra.mxu0 0.0
    %473 = vmatprep.subr.mxu0 0.0
    %474 = vmatpush1.xpose.msra.mxu0 0.0
    %475 = vmatprep.subr.mxu0 0.0
    %476 = vmatpush1.xpose.msra.mxu0 0.0
    %477 = vmatprep.subr.mxu0 0.0
    %478 = vmatpush1.xpose.msra.mxu0 0.0
    %479 = vmatprep.subr.mxu0 0.0
    %480 = vmatpush1.xpose.msra.mxu0 0.0
    %481 = vmatprep.subr.mxu0 0.0
    %482 = vmatpush1.xpose.msra.mxu0 0.0
    %483 = vmatprep.subr.mxu0 0.0
    %484 = vmatpush1.xpose.msra.mxu0 0.0
    %485 = vmatprep.subr.mxu0 0.0
    %486 = vmatpush1.xpose.msra.mxu0 0.0
    %487 = vmatprep.subr.mxu0 0.0
    %488 = vmatpush1.xpose.msra.mxu0 0.0
    %489 = vmatprep.subr.mxu0 0.0
    %490 = vmatpush1.xpose.msra.mxu0 0.0
    %491 = vmatprep.subr.mxu0 0.0
    %492 = vmatpush1.xpose.msra.mxu0 0.0
    %493 = vmatprep.subr.mxu0 0.0
    %494 = vmatpush1.xpose.msra.mxu0 0.0
    %495 = vmatprep.subr.mxu0 0.0
    %496 = vmatpush1.xpose.msra.mxu0 0.0
    %497 = vmatprep.subr.mxu0 0.0
    %498 = vmatpush1.xpose.msra.mxu0 0.0
    %499 = vmatprep.subr.mxu0 0.0
    %500 = vmatpush1.xpose.msra.mxu0 0.0
    %501 = vmatprep.subr.mxu0 0.0
    %502 = vmatpush1.xpose.msra.mxu0 0.0
    %503 = vmatprep.subr.mxu0 0.0
    %504 = vmatpush1.xpose.msra.mxu0 0.0
    %505 = vmatprep.subr.mxu0 0.0
    %506 = vmatpush1.xpose.msra.mxu0 0.0
    %507 = vmatprep.subr.mxu0 0.0
    %508 = vmatpush1.xpose.msra.mxu0 0.0
    %509 = vmatprep.subr.mxu0 0.0
    %510 = vmatpush1.xpose.msra.mxu0 0.0
    %511 = vmatprep.subr.mxu0 0.0
    %512 = vmatpush1.xpose.msra.mxu0 0.0
    %513 = vmatprep.subr.mxu0 0.0
    %514 = vmatpush1.xpose.msra.mxu0 0.0
    %515 = vmatprep.subr.mxu0 0.0
    %516 = vmatpush1.xpose.msra.mxu0 0.0
    %517 = vmatprep.subr.mxu0 0.0
    %518 = vmatpush1.xpose.msra.mxu0 0.0
    %519 = vmatprep.subr.mxu0 0.0
    %520 = vmatpush1.xpose.msra.mxu0 0.0
    %521 = vmatprep.subr.mxu0 0.0
    %522 = vmatpush1.xpose.msra.mxu0 0.0
    %523 = vmatprep.subr.mxu0 0.0
    %524 = vmatpush1.xpose.msra.mxu0 0.0
    %525 = vmatprep.subr.mxu0 0.0
    %526 = vmatpush1.xpose.msra.mxu0 0.0
    %527 = vmatprep.subr.mxu0 0.0
    %528 = vmatpush1.xpose.msra.mxu0 0.0
    %529 = vmatprep.mubr.f32.mxu0 0.0
    %530 = vmatmul.mubr.f32.gmra.mrb[0].mxu0 %v461
    %v531 = vpop.f32.mrb[0].mxu0
    %v532 = vadd.f32 0.0, %v531
    %v533 = vpop.f32.mrb[0].mxu0
    %534 = vdwg.mxu0
    %535 = vrot.lane.b32.xlu0 %v125, 120
    %v536 = vpop.permute.xlu0 %535
    %537 = vrot.lane.b32.xlu0 %v125, 88
    %v538 = vpop.permute.xlu0 %537
    %v539 = vsel %vm131, %v536, 0
    %v541 = vsel %vm131, %v538, 0
    %543 = vmatprep.subr.mxu0 0.0
    %544 = vmatpush1.xpose.msra.mxu0 %v541
    %545 = vmatprep.subr.mxu0 0.0
    %546 = vmatpush1.xpose.msra.mxu0 0.0
    %547 = vmatprep.subr.mxu0 0.0
    %548 = vmatpush1.xpose.msra.mxu0 0.0
    %549 = vmatprep.subr.mxu0 0.0
    %550 = vmatpush1.xpose.msra.mxu0 0.0
    %551 = vmatprep.subr.mxu0 0.0
    %552 = vmatpush1.xpose.msra.mxu0 0.0
    %553 = vmatprep.subr.mxu0 0.0
    %554 = vmatpush1.xpose.msra.mxu0 0.0
    %555 = vmatprep.subr.mxu0 0.0
    %556 = vmatpush1.xpose.msra.mxu0 0.0
    %557 = vmatprep.subr.mxu0 0.0
    %558 = vmatpush1.xpose.msra.mxu0 0.0
    %559 = vmatprep.subr.mxu0 0.0
    %560 = vmatpush1.xpose.msra.mxu0 0.0
    %561 = vmatprep.subr.mxu0 0.0
    %562 = vmatpush1.xpose.msra.mxu0 0.0
    %563 = vmatprep.subr.mxu0 0.0
    %564 = vmatpush1.xpose.msra.mxu0 0.0
    %565 = vmatprep.subr.mxu0 0.0
    %566 = vmatpush1.xpose.msra.mxu0 0.0
    %567 = vmatprep.subr.mxu0 0.0
    %568 = vmatpush1.xpose.msra.mxu0 0.0
    %569 = vmatprep.subr.mxu0 0.0
    %570 = vmatpush1.xpose.msra.mxu0 0.0
    %571 = vmatprep.subr.mxu0 0.0
    %572 = vmatpush1.xpose.msra.mxu0 0.0
    %573 = vmatprep.subr.mxu0 0.0
    %574 = vmatpush1.xpose.msra.mxu0 0.0
    %575 = vmatprep.subr.mxu0 0.0
    %576 = vmatpush1.xpose.msra.mxu0 0.0
    %577 = vmatprep.subr.mxu0 0.0
    %578 = vmatpush1.xpose.msra.mxu0 0.0
    %579 = vmatprep.subr.mxu0 0.0
    %580 = vmatpush1.xpose.msra.mxu0 0.0
    %581 = vmatprep.subr.mxu0 0.0
    %582 = vmatpush1.xpose.msra.mxu0 0.0
    %583 = vmatprep.subr.mxu0 0.0
    %584 = vmatpush1.xpose.msra.mxu0 0.0
    %585 = vmatprep.subr.mxu0 0.0
    %586 = vmatpush1.xpose.msra.mxu0 0.0
    %587 = vmatprep.subr.mxu0 0.0
    %588 = vmatpush1.xpose.msra.mxu0 0.0
    %589 = vmatprep.subr.mxu0 0.0
    %590 = vmatpush1.xpose.msra.mxu0 0.0
    %591 = vmatprep.subr.mxu0 0.0
    %592 = vmatpush1.xpose.msra.mxu0 0.0
    %593 = vmatprep.subr.mxu0 0.0
    %594 = vmatpush1.xpose.msra.mxu0 0.0
    %595 = vmatprep.subr.mxu0 0.0
    %596 = vmatpush1.xpose.msra.mxu0 0.0
    %597 = vmatprep.subr.mxu0 0.0
    %598 = vmatpush1.xpose.msra.mxu0 0.0
    %599 = vmatprep.subr.mxu0 0.0
    %600 = vmatpush1.xpose.msra.mxu0 0.0
    %601 = vmatprep.subr.mxu0 0.0
    %602 = vmatpush1.xpose.msra.mxu0 0.0
    %603 = vmatprep.subr.mxu0 0.0
    %604 = vmatpush1.xpose.msra.mxu0 0.0
    %605 = vmatprep.subr.mxu0 0.0
    %606 = vmatpush1.xpose.msra.mxu0 0.0
    %607 = vmatprep.mubr.f32.mxu0 0.0
    %608 = vmatmul.mubr.f32.gmra.mrb[0].mxu0 %v539
    %v609 = vpop.f32.mrb[0].mxu0
    %v610 = vadd.f32 0.0, %v609
    %v611 = vpop.f32.mrb[0].mxu0
    %612 = vdwg.mxu0
    %v613 = vsel %vm131, %v532, -inf
    %614 = vmax.xlane.f32.xlu0 %v613
    %v615 = vpop.xlane.xlu0 %614
    %v616 = vsel %vm131, %v610, -inf
    %617 = vmax.xlane.f32.xlu0 %v616
    %v618 = vpop.xlane.xlu0 %617
    %v619 = vsub.f32 %v532, %v615
    %v620 = vsub.f32 %v610, %v618
    %v621 = vmul.f32 %v619, 1.442695
    %v622 = vpow.pop %v621
    %v623 = vmul.f32 %v620, 1.442695
    %v624 = vpow.pop %v623
    %v625 = vsel %vm131, %v622, 0.0
    %626 = vadd.xlane.f32.xlu0 %v625
    %v627 = vpop.xlane.xlu0 %626
    %v628 = vsel %vm131, %v624, 0.0
    %629 = vadd.xlane.f32.xlu0 %v628
    %v630 = vpop.xlane.xlu0 %629
    %v631 = vrcp.pop %v627
    %v632 = vrcp.pop %v630
    %v633 = vmul.f32 %v622, %v631
    %v634 = vmul.f32 %v624, %v632
    %635 = vrot.lane.b32.xlu0 %v120, 56
    %v636 = vpop.permute.xlu0 %635
    %v639 = vsel %vm131, %v633, 0
    %641 = vmatprep.subr.mxu0 0.0
    %642 = vmatpush1.msra.mxu0 %v636
    %643 = vmatprep.subr.mxu0 0.0
    %644 = vmatpush1.msra.mxu0 0.0
    %645 = vmatprep.subr.mxu0 0.0
    %646 = vmatpush1.msra.mxu0 0.0
    %647 = vmatprep.subr.mxu0 0.0
    %648 = vmatpush1.msra.mxu0 0.0
    %649 = vmatprep.subr.mxu0 0.0
    %650 = vmatpush1.msra.mxu0 0.0
    %651 = vmatprep.subr.mxu0 0.0
    %652 = vmatpush1.msra.mxu0 0.0
    %653 = vmatprep.subr.mxu0 0.0
    %654 = vmatpush1.msra.mxu0 0.0
    %655 = vmatprep.subr.mxu0 0.0
    %656 = vmatpush1.msra.mxu0 0.0
    %657 = vmatprep.subr.mxu0 0.0
    %658 = vmatpush1.msra.mxu0 0.0
    %659 = vmatprep.subr.mxu0 0.0
    %660 = vmatpush1.msra.mxu0 0.0
    %661 = vmatprep.subr.mxu0 0.0
    %662 = vmatpush1.msra.mxu0 0.0
    %663 = vmatprep.subr.mxu0 0.0
    %664 = vmatpush1.msra.mxu0 0.0
    %665 = vmatprep.subr.mxu0 0.0
    %666 = vmatpush1.msra.mxu0 0.0
    %667 = vmatprep.subr.mxu0 0.0
    %668 = vmatpush1.msra.mxu0 0.0
    %669 = vmatprep.subr.mxu0 0.0
    %670 = vmatpush1.msra.mxu0 0.0
    %671 = vmatprep.subr.mxu0 0.0
    %672 = vmatpush1.msra.mxu0 0.0
    %673 = vmatprep.subr.mxu0 0.0
    %674 = vmatpush1.msra.mxu0 0.0
    %675 = vmatprep.subr.mxu0 0.0
    %676 = vmatpush1.msra.mxu0 0.0
    %677 = vmatprep.subr.mxu0 0.0
    %678 = vmatpush1.msra.mxu0 0.0
    %679 = vmatprep.subr.mxu0 0.0
    %680 = vmatpush1.msra.mxu0 0.0
    %681 = vmatprep.subr.mxu0 0.0
    %682 = vmatpush1.msra.mxu0 0.0
    %683 = vmatprep.subr.mxu0 0.0
    %684 = vmatpush1.msra.mxu0 0.0
    %685 = vmatprep.subr.mxu0 0.0
    %686 = vmatpush1.msra.mxu0 0.0
    %687 = vmatprep.subr.mxu0 0.0
    %688 = vmatpush1.msra.mxu0 0.0
    %689 = vmatprep.subr.mxu0 0.0
    %690 = vmatpush1.msra.mxu0 0.0
    %691 = vmatprep.subr.mxu0 0.0
    %692 = vmatpush1.msra.mxu0 0.0
    %693 = vmatprep.subr.mxu0 0.0
    %694 = vmatpush1.msra.mxu0 0.0
    %695 = vmatprep.subr.mxu0 0.0
    %696 = vmatpush1.msra.mxu0 0.0
    %697 = vmatprep.subr.mxu0 0.0
    %698 = vmatpush1.msra.mxu0 0.0
    %699 = vmatprep.subr.mxu0 0.0
    %700 = vmatpush1.msra.mxu0 0.0
    %701 = vmatprep.subr.mxu0 0.0
    %702 = vmatpush1.msra.mxu0 0.0
    %703 = vmatprep.subr.mxu0 0.0
    %704 = vmatpush1.msra.mxu0 0.0
    %705 = vmatprep.mubr.f32.mxu0 0.0
    %706 = vmatmul.mubr.f32.gmra.mrb[0].mxu0 %v639
    %v707 = vpop.f32.mrb[0].mxu0
    %v708 = vadd.f32 0.0, %v707
    %v709 = vpop.f32.mrb[0].mxu0
    %710 = vdwg.mxu0
    %711 = vrot.lane.b32.xlu0 %v125, 56
    %v712 = vpop.permute.xlu0 %711
    %v715 = vsel %vm131, %v634, 0
    %717 = vmatprep.subr.mxu0 0.0
    %718 = vmatpush1.msra.mxu0 %v712
    %719 = vmatprep.subr.mxu0 0.0
    %720 = vmatpush1.msra.mxu0 0.0
    %721 = vmatprep.subr.mxu0 0.0
    %722 = vmatpush1.msra.mxu0 0.0
    %723 = vmatprep.subr.mxu0 0.0
    %724 = vmatpush1.msra.mxu0 0.0
    %725 = vmatprep.subr.mxu0 0.0
    %726 = vmatpush1.msra.mxu0 0.0
    %727 = vmatprep.subr.mxu0 0.0
    %728 = vmatpush1.msra.mxu0 0.0
    %729 = vmatprep.subr.mxu0 0.0
    %730 = vmatpush1.msra.mxu0 0.0
    %731 = vmatprep.subr.mxu0 0.0
    %732 = vmatpush1.msra.mxu0 0.0
    %733 = vmatprep.subr.mxu0 0.0
    %734 = vmatpush1.msra.mxu0 0.0
    %735 = vmatprep.subr.mxu0 0.0
    %736 = vmatpush1.msra.mxu0 0.0
    %737 = vmatprep.subr.mxu0 0.0
    %738 = vmatpush1.msra.mxu0 0.0
    %739 = vmatprep.subr.mxu0 0.0
    %740 = vmatpush1.msra.mxu0 0.0
    %741 = vmatprep.subr.mxu0 0.0
    %742 = vmatpush1.msra.mxu0 0.0
    %743 = vmatprep.subr.mxu0 0.0
    %744 = vmatpush1.msra.mxu0 0.0
    %745 = vmatprep.subr.mxu0 0.0
    %746 = vmatpush1.msra.mxu0 0.0
    %747 = vmatprep.subr.mxu0 0.0
    %748 = vmatpush1.msra.mxu0 0.0
    %749 = vmatprep.subr.mxu0 0.0
    %750 = vmatpush1.msra.mxu0 0.0
    %751 = vmatprep.subr.mxu0 0.0
    %752 = vmatpush1.msra.mxu0 0.0
    %753 = vmatprep.subr.mxu0 0.0
    %754 = vmatpush1.msra.mxu0 0.0
    %755 = vmatprep.subr.mxu0 0.0
    %756 = vmatpush1.msra.mxu0 0.0
    %757 = vmatprep.subr.mxu0 0.0
    %758 = vmatpush1.msra.mxu0 0.0
    %759 = vmatprep.subr.mxu0 0.0
    %760 = vmatpush1.msra.mxu0 0.0
    %761 = vmatprep.subr.mxu0 0.0
    %762 = vmatpush1.msra.mxu0 0.0
    %763 = vmatprep.subr.mxu0 0.0
    %764 = vmatpush1.msra.mxu0 0.0
    %765 = vmatprep.subr.mxu0 0.0
    %766 = vmatpush1.msra.mxu0 0.0
    %767 = vmatprep.subr.mxu0 0.0
    %768 = vmatpush1.msra.mxu0 0.0
    %769 = vmatprep.subr.mxu0 0.0
    %770 = vmatpush1.msra.mxu0 0.0
    %771 = vmatprep.subr.mxu0 0.0
    %772 = vmatpush1.msra.mxu0 0.0
    %773 = vmatprep.subr.mxu0 0.0
    %774 = vmatpush1.msra.mxu0 0.0
    %775 = vmatprep.subr.mxu0 0.0
    %776 = vmatpush1.msra.mxu0 0.0
    %777 = vmatprep.subr.mxu0 0.0
    %778 = vmatpush1.msra.mxu0 0.0
    %779 = vmatprep.subr.mxu0 0.0
    %780 = vmatpush1.msra.mxu0 0.0
    %781 = vmatprep.mubr.f32.mxu0 0.0
    %782 = vmatmul.mubr.f32.gmra.mrb[0].mxu0 %v715
    %v783 = vpop.f32.mrb[0].mxu0
    %v784 = vadd.f32 0.0, %v783
    %v785 = vpop.f32.mrb[0].mxu0
    %786 = vdwg.mxu0
    %787 = vrot.lane.b32.xlu0 %v120, 112
    %v788 = vpop.permute.xlu0 %787
    %789 = vrot.lane.b32.xlu0 %v120, 80
    %v790 = vpop.permute.xlu0 %789
    %v791 = vsel %vm131, %v788, 0
    %v793 = vsel %vm131, %v790, 0
    %795 = vmatprep.subr.mxu0 0.0
    %796 = vmatpush1.xpose.msra.mxu0 %v793
    %797 = vmatprep.subr.mxu0 0.0
    %798 = vmatpush1.xpose.msra.mxu0 0.0
    %799 = vmatprep.subr.mxu0 0.0
    %800 = vmatpush1.xpose.msra.mxu0 0.0
    %801 = vmatprep.subr.mxu0 0.0
    %802 = vmatpush1.xpose.msra.mxu0 0.0
    %803 = vmatprep.subr.mxu0 0.0
    %804 = vmatpush1.xpose.msra.mxu0 0.0
    %805 = vmatprep.subr.mxu0 0.0
    %806 = vmatpush1.xpose.msra.mxu0 0.0
    %807 = vmatprep.subr.mxu0 0.0
    %808 = vmatpush1.xpose.msra.mxu0 0.0
    %809 = vmatprep.subr.mxu0 0.0
    %810 = vmatpush1.xpose.msra.mxu0 0.0
    %811 = vmatprep.subr.mxu0 0.0
    %812 = vmatpush1.xpose.msra.mxu0 0.0
    %813 = vmatprep.subr.mxu0 0.0
    %814 = vmatpush1.xpose.msra.mxu0 0.0
    %815 = vmatprep.subr.mxu0 0.0
    %816 = vmatpush1.xpose.msra.mxu0 0.0
    %817 = vmatprep.subr.mxu0 0.0
    %818 = vmatpush1.xpose.msra.mxu0 0.0
    %819 = vmatprep.subr.mxu0 0.0
    %820 = vmatpush1.xpose.msra.mxu0 0.0
    %821 = vmatprep.subr.mxu0 0.0
    %822 = vmatpush1.xpose.msra.mxu0 0.0
    %823 = vmatprep.subr.mxu0 0.0
    %824 = vmatpush1.xpose.msra.mxu0 0.0
    %825 = vmatprep.subr.mxu0 0.0
    %826 = vmatpush1.xpose.msra.mxu0 0.0
    %827 = vmatprep.subr.mxu0 0.0
    %828 = vmatpush1.xpose.msra.mxu0 0.0
    %829 = vmatprep.subr.mxu0 0.0
    %830 = vmatpush1.xpose.msra.mxu0 0.0
    %831 = vmatprep.subr.mxu0 0.0
    %832 = vmatpush1.xpose.msra.mxu0 0.0
    %833 = vmatprep.subr.mxu0 0.0
    %834 = vmatpush1.xpose.msra.mxu0 0.0
    %835 = vmatprep.subr.mxu0 0.0
    %836 = vmatpush1.xpose.msra.mxu0 0.0
    %837 = vmatprep.subr.mxu0 0.0
    %838 = vmatpush1.xpose.msra.mxu0 0.0
    %839 = vmatprep.subr.mxu0 0.0
    %840 = vmatpush1.xpose.msra.mxu0 0.0
    %841 = vmatprep.subr.mxu0 0.0
    %842 = vmatpush1.xpose.msra.mxu0 0.0
    %843 = vmatprep.subr.mxu0 0.0
    %844 = vmatpush1.xpose.msra.mxu0 0.0
    %845 = vmatprep.subr.mxu0 0.0
    %846 = vmatpush1.xpose.msra.mxu0 0.0
    %847 = vmatprep.subr.mxu0 0.0
    %848 = vmatpush1.xpose.msra.mxu0 0.0
    %849 = vmatprep.subr.mxu0 0.0
    %850 = vmatpush1.xpose.msra.mxu0 0.0
    %851 = vmatprep.subr.mxu0 0.0
    %852 = vmatpush1.xpose.msra.mxu0 0.0
    %853 = vmatprep.subr.mxu0 0.0
    %854 = vmatpush1.xpose.msra.mxu0 0.0
    %855 = vmatprep.subr.mxu0 0.0
    %856 = vmatpush1.xpose.msra.mxu0 0.0
    %857 = vmatprep.subr.mxu0 0.0
    %858 = vmatpush1.xpose.msra.mxu0 0.0
    %859 = vmatprep.mubr.f32.mxu0 0.0
    %860 = vmatmul.mubr.f32.gmra.mrb[0].mxu0 %v791
    %v861 = vpop.f32.mrb[0].mxu0
    %v862 = vadd.f32 0.0, %v861
    %v863 = vpop.f32.mrb[0].mxu0
    %864 = vdwg.mxu0
    %865 = vrot.lane.b32.xlu0 %v125, 112
    %v866 = vpop.permute.xlu0 %865
    %867 = vrot.lane.b32.xlu0 %v125, 80
    %v868 = vpop.permute.xlu0 %867
    %v869 = vsel %vm131, %v866, 0
    %v871 = vsel %vm131, %v868, 0
    %873 = vmatprep.subr.mxu0 0.0
    %874 = vmatpush1.xpose.msra.mxu0 %v871
    %875 = vmatprep.subr.mxu0 0.0
    %876 = vmatpush1.xpose.msra.mxu0 0.0
    %877 = vmatprep.subr.mxu0 0.0
    %878 = vmatpush1.xpose.msra.mxu0 0.0
    %879 = vmatprep.subr.mxu0 0.0
    %880 = vmatpush1.xpose.msra.mxu0 0.0
    %881 = vmatprep.subr.mxu0 0.0
    %882 = vmatpush1.xpose.msra.mxu0 0.0
    %883 = vmatprep.subr.mxu0 0.0
    %884 = vmatpush1.xpose.msra.mxu0 0.0
    %885 = vmatprep.subr.mxu0 0.0
    %886 = vmatpush1.xpose.msra.mxu0 0.0
    %887 = vmatprep.subr.mxu0 0.0
    %888 = vmatpush1.xpose.msra.mxu0 0.0
    %889 = vmatprep.subr.mxu0 0.0
    %890 = vmatpush1.xpose.msra.mxu0 0.0
    %891 = vmatprep.subr.mxu0 0.0
    %892 = vmatpush1.xpose.msra.mxu0 0.0
    %893 = vmatprep.subr.mxu0 0.0
    %894 = vmatpush1.xpose.msra.mxu0 0.0
    %895 = vmatprep.subr.mxu0 0.0
    %896 = vmatpush1.xpose.msra.mxu0 0.0
    %897 = vmatprep.subr.mxu0 0.0
    %898 = vmatpush1.xpose.msra.mxu0 0.0
    %899 = vmatprep.subr.mxu0 0.0
    %900 = vmatpush1.xpose.msra.mxu0 0.0
    %901 = vmatprep.subr.mxu0 0.0
    %902 = vmatpush1.xpose.msra.mxu0 0.0
    %903 = vmatprep.subr.mxu0 0.0
    %904 = vmatpush1.xpose.msra.mxu0 0.0
    %905 = vmatprep.subr.mxu0 0.0
    %906 = vmatpush1.xpose.msra.mxu0 0.0
    %907 = vmatprep.subr.mxu0 0.0
    %908 = vmatpush1.xpose.msra.mxu0 0.0
    %909 = vmatprep.subr.mxu0 0.0
    %910 = vmatpush1.xpose.msra.mxu0 0.0
    %911 = vmatprep.subr.mxu0 0.0
    %912 = vmatpush1.xpose.msra.mxu0 0.0
    %913 = vmatprep.subr.mxu0 0.0
    %914 = vmatpush1.xpose.msra.mxu0 0.0
    %915 = vmatprep.subr.mxu0 0.0
    %916 = vmatpush1.xpose.msra.mxu0 0.0
    %917 = vmatprep.subr.mxu0 0.0
    %918 = vmatpush1.xpose.msra.mxu0 0.0
    %919 = vmatprep.subr.mxu0 0.0
    %920 = vmatpush1.xpose.msra.mxu0 0.0
    %921 = vmatprep.subr.mxu0 0.0
    %922 = vmatpush1.xpose.msra.mxu0 0.0
    %923 = vmatprep.subr.mxu0 0.0
    %924 = vmatpush1.xpose.msra.mxu0 0.0
    %925 = vmatprep.subr.mxu0 0.0
    %926 = vmatpush1.xpose.msra.mxu0 0.0
    %927 = vmatprep.subr.mxu0 0.0
    %928 = vmatpush1.xpose.msra.mxu0 0.0
    %929 = vmatprep.subr.mxu0 0.0
    %930 = vmatpush1.xpose.msra.mxu0 0.0
    %931 = vmatprep.subr.mxu0 0.0
    %932 = vmatpush1.xpose.msra.mxu0 0.0
    %933 = vmatprep.subr.mxu0 0.0
    %934 = vmatpush1.xpose.msra.mxu0 0.0
    %935 = vmatprep.subr.mxu0 0.0
    %936 = vmatpush1.xpose.msra.mxu0 0.0
    %937 = vmatprep.mubr.f32.mxu0 0.0
    %938 = vmatmul.mubr.f32.gmra.mrb[0].mxu0 %v869
    %v939 = vpop.f32.mrb[0].mxu0
    %v940 = vadd.f32 0.0, %v939
    %v941 = vpop.f32.mrb[0].mxu0
    %942 = vdwg.mxu0
    %v943 = vsel %vm131, %v862, -inf
    %944 = vmax.xlane.f32.xlu0 %v943
    %v945 = vpop.xlane.xlu0 %944
    %v946 = vsel %vm131, %v940, -inf
    %947 = vmax.xlane.f32.xlu0 %v946
    %v948 = vpop.xlane.xlu0 %947
    %v949 = vsub.f32 %v862, %v945
    %v950 = vsub.f32 %v940, %v948
    %v951 = vmul.f32 %v949, 1.442695
    %v952 = vpow.pop %v951
    %v953 = vmul.f32 %v950, 1.442695
    %v954 = vpow.pop %v953
    %v955 = vsel %vm131, %v952, 0.0
    %956 = vadd.xlane.f32.xlu0 %v955
    %v957 = vpop.xlane.xlu0 %956
    %v958 = vsel %vm131, %v954, 0.0
    %959 = vadd.xlane.f32.xlu0 %v958
    %v960 = vpop.xlane.xlu0 %959
    %v961 = vrcp.pop %v957
    %v962 = vrcp.pop %v960
    %v963 = vmul.f32 %v952, %v961
    %v964 = vmul.f32 %v954, %v962
    %965 = vrot.lane.b32.xlu0 %v120, 48
    %v966 = vpop.permute.xlu0 %965
    %v969 = vsel %vm131, %v963, 0
    %971 = vmatprep.subr.mxu0 0.0
    %972 = vmatpush1.msra.mxu0 %v966
    %973 = vmatprep.subr.mxu0 0.0
    %974 = vmatpush1.msra.mxu0 0.0
    %975 = vmatprep.subr.mxu0 0.0
    %976 = vmatpush1.msra.mxu0 0.0
    %977 = vmatprep.subr.mxu0 0.0
    %978 = vmatpush1.msra.mxu0 0.0
    %979 = vmatprep.subr.mxu0 0.0
    %980 = vmatpush1.msra.mxu0 0.0
    %981 = vmatprep.subr.mxu0 0.0
    %982 = vmatpush1.msra.mxu0 0.0
    %983 = vmatprep.subr.mxu0 0.0
    %984 = vmatpush1.msra.mxu0 0.0
    %985 = vmatprep.subr.mxu0 0.0
    %986 = vmatpush1.msra.mxu0 0.0
    %987 = vmatprep.subr.mxu0 0.0
    %988 = vmatpush1.msra.mxu0 0.0
    %989 = vmatprep.subr.mxu0 0.0
    %990 = vmatpush1.msra.mxu0 0.0
    %991 = vmatprep.subr.mxu0 0.0
    %992 = vmatpush1.msra.mxu0 0.0
    %993 = vmatprep.subr.mxu0 0.0
    %994 = vmatpush1.msra.mxu0 0.0
    %995 = vmatprep.subr.mxu0 0.0
    %996 = vmatpush1.msra.mxu0 0.0
    %997 = vmatprep.subr.mxu0 0.0
    %998 = vmatpush1.msra.mxu0 0.0
    %999 = vmatprep.subr.mxu0 0.0
    %1000 = vmatpush1.msra.mxu0 0.0
    %1001 = vmatprep.subr.mxu0 0.0
    %1002 = vmatpush1.msra.mxu0 0.0
    %1003 = vmatprep.subr.mxu0 0.0
    %1004 = vmatpush1.msra.mxu0 0.0
    %1005 = vmatprep.subr.mxu0 0.0
    %1006 = vmatpush1.msra.mxu0 0.0
    %1007 = vmatprep.subr.mxu0 0.0
    %1008 = vmatpush1.msra.mxu0 0.0
    %1009 = vmatprep.subr.mxu0 0.0
    %1010 = vmatpush1.msra.mxu0 0.0
    %1011 = vmatprep.subr.mxu0 0.0
    %1012 = vmatpush1.msra.mxu0 0.0
    %1013 = vmatprep.subr.mxu0 0.0
    %1014 = vmatpush1.msra.mxu0 0.0
    %1015 = vmatprep.subr.mxu0 0.0
    %1016 = vmatpush1.msra.mxu0 0.0
    %1017 = vmatprep.subr.mxu0 0.0
    %1018 = vmatpush1.msra.mxu0 0.0
    %1019 = vmatprep.subr.mxu0 0.0
    %1020 = vmatpush1.msra.mxu0 0.0
    %1021 = vmatprep.subr.mxu0 0.0
    %1022 = vmatpush1.msra.mxu0 0.0
    %1023 = vmatprep.subr.mxu0 0.0
    %1024 = vmatpush1.msra.mxu0 0.0
    %1025 = vmatprep.subr.mxu0 0.0
    %1026 = vmatpush1.msra.mxu0 0.0
    %1027 = vmatprep.subr.mxu0 0.0
    %1028 = vmatpush1.msra.mxu0 0.0
    %1029 = vmatprep.subr.mxu0 0.0
    %1030 = vmatpush1.msra.mxu0 0.0
    %1031 = vmatprep.subr.mxu0 0.0
    %1032 = vmatpush1.msra.mxu0 0.0
    %1033 = vmatprep.subr.mxu0 0.0
    %1034 = vmatpush1.msra.mxu0 0.0
    %1035 = vmatprep.mubr.f32.mxu0 0.0
    %1036 = vmatmul.mubr.f32.gmra.mrb[0].mxu0 %v969
    %v1037 = vpop.f32.mrb[0].mxu0
    %v1038 = vadd.f32 0.0, %v1037
    %v1039 = vpop.f32.mrb[0].mxu0
    %1040 = vdwg.mxu0
    %1041 = vrot.lane.b32.xlu0 %v125, 48
    %v1042 = vpop.permute.xlu0 %1041
    %v1045 = vsel %vm131, %v964, 0
    %1047 = vmatprep.subr.mxu0 0.0
    %1048 = vmatpush1.msra.mxu0 %v1042
    %1049 = vmatprep.subr.mxu0 0.0
    %1050 = vmatpush1.msra.mxu0 0.0
    %1051 = vmatprep.subr.mxu0 0.0
    %1052 = vmatpush1.msra.mxu0 0.0
    %1053 = vmatprep.subr.mxu0 0.0
    %1054 = vmatpush1.msra.mxu0 0.0
    %1055 = vmatprep.subr.mxu0 0.0
    %1056 = vmatpush1.msra.mxu0 0.0
    %1057 = vmatprep.subr.mxu0 0.0
    %1058 = vmatpush1.msra.mxu0 0.0
    %1059 = vmatprep.subr.mxu0 0.0
    %1060 = vmatpush1.msra.mxu0 0.0
    %1061 = vmatprep.subr.mxu0 0.0
    %1062 = vmatpush1.msra.mxu0 0.0
    %1063 = vmatprep.subr.mxu0 0.0
    %1064 = vmatpush1.msra.mxu0 0.0
    %1065 = vmatprep.subr.mxu0 0.0
    %1066 = vmatpush1.msra.mxu0 0.0
    %1067 = vmatprep.subr.mxu0 0.0
    %1068 = vmatpush1.msra.mxu0 0.0
    %1069 = vmatprep.subr.mxu0 0.0
    %1070 = vmatpush1.msra.mxu0 0.0
    %1071 = vmatprep.subr.mxu0 0.0
    %1072 = vmatpush1.msra.mxu0 0.0
    %1073 = vmatprep.subr.mxu0 0.0
    %1074 = vmatpush1.msra.mxu0 0.0
    %1075 = vmatprep.subr.mxu0 0.0
    %1076 = vmatpush1.msra.mxu0 0.0
    %1077 = vmatprep.subr.mxu0 0.0
    %1078 = vmatpush1.msra.mxu0 0.0
    %1079 = vmatprep.subr.mxu0 0.0
    %1080 = vmatpush1.msra.mxu0 0.0
    %1081 = vmatprep.subr.mxu0 0.0
    %1082 = vmatpush1.msra.mxu0 0.0
    %1083 = vmatprep.subr.mxu0 0.0
    %1084 = vmatpush1.msra.mxu0 0.0
    %1085 = vmatprep.subr.mxu0 0.0
    %1086 = vmatpush1.msra.mxu0 0.0
    %1087 = vmatprep.subr.mxu0 0.0
    %1088 = vmatpush1.msra.mxu0 0.0
    %1089 = vmatprep.subr.mxu0 0.0
    %1090 = vmatpush1.msra.mxu0 0.0
    %1091 = vmatprep.subr.mxu0 0.0
    %1092 = vmatpush1.msra.mxu0 0.0
    %1093 = vmatprep.subr.mxu0 0.0
    %1094 = vmatpush1.msra.mxu0 0.0
    %1095 = vmatprep.subr.mxu0 0.0
    %1096 = vmatpush1.msra.mxu0 0.0
    %1097 = vmatprep.subr.mxu0 0.0
    %1098 = vmatpush1.msra.mxu0 0.0
    %1099 = vmatprep.subr.mxu0 0.0
    %1100 = vmatpush1.msra.mxu0 0.0
    %1101 = vmatprep.subr.mxu0 0.0
    %1102 = vmatpush1.msra.mxu0 0.0
    %1103 = vmatprep.subr.mxu0 0.0
    %1104 = vmatpush1.msra.mxu0 0.0
    %1105 = vmatprep.subr.mxu0 0.0
    %1106 = vmatpush1.msra.mxu0 0.0
    %1107 = vmatprep.subr.mxu0 0.0
    %1108 = vmatpush1.msra.mxu0 0.0
    %1109 = vmatprep.subr.mxu0 0.0
    %1110 = vmatpush1.msra.mxu0 0.0
    %1111 = vmatprep.mubr.f32.mxu0 0.0
    %1112 = vmatmul.mubr.f32.gmra.mrb[0].mxu0 %v1045
    %v1113 = vpop.f32.mrb[0].mxu0
    %v1114 = vadd.f32 0.0, %v1113
    %v1115 = vpop.f32.mrb[0].mxu0
    %1116 = vdwg.mxu0
    %1117 = vrot.lane.b32.xlu0 %v120, 104
    %v1118 = vpop.permute.xlu0 %1117
    %1119 = vrot.lane.b32.xlu0 %v120, 72
    %v1120 = vpop.permute.xlu0 %1119
    %v1121 = vsel %vm131, %v1118, 0
    %v1123 = vsel %vm131, %v1120, 0
    %1125 = vmatprep.subr.mxu0 0.0
    %1126 = vmatpush1.xpose.msra.mxu0 %v1123
    %1127 = vmatprep.subr.mxu0 0.0
    %1128 = vmatpush1.xpose.msra.mxu0 0.0
    %1129 = vmatprep.subr.mxu0 0.0
    %1130 = vmatpush1.xpose.msra.mxu0 0.0
    %1131 = vmatprep.subr.mxu0 0.0
    %1132 = vmatpush1.xpose.msra.mxu0 0.0
    %1133 = vmatprep.subr.mxu0 0.0
    %1134 = vmatpush1.xpose.msra.mxu0 0.0
    %1135 = vmatprep.subr.mxu0 0.0
    %1136 = vmatpush1.xpose.msra.mxu0 0.0
    %1137 = vmatprep.subr.mxu0 0.0
    %1138 = vmatpush1.xpose.msra.mxu0 0.0
    %1139 = vmatprep.subr.mxu0 0.0
    %1140 = vmatpush1.xpose.msra.mxu0 0.0
    %1141 = vmatprep.subr.mxu0 0.0
    %1142 = vmatpush1.xpose.msra.mxu0 0.0
    %1143 = vmatprep.subr.mxu0 0.0
    %1144 = vmatpush1.xpose.msra.mxu0 0.0
    %1145 = vmatprep.subr.mxu0 0.0
    %1146 = vmatpush1.xpose.msra.mxu0 0.0
    %1147 = vmatprep.subr.mxu0 0.0
    %1148 = vmatpush1.xpose.msra.mxu0 0.0
    %1149 = vmatprep.subr.mxu0 0.0
    %1150 = vmatpush1.xpose.msra.mxu0 0.0
    %1151 = vmatprep.subr.mxu0 0.0
    %1152 = vmatpush1.xpose.msra.mxu0 0.0
    %1153 = vmatprep.subr.mxu0 0.0
    %1154 = vmatpush1.xpose.msra.mxu0 0.0
    %1155 = vmatprep.subr.mxu0 0.0
    %1156 = vmatpush1.xpose.msra.mxu0 0.0
    %1157 = vmatprep.subr.mxu0 0.0
    %1158 = vmatpush1.xpose.msra.mxu0 0.0
    %1159 = vmatprep.subr.mxu0 0.0
    %1160 = vmatpush1.xpose.msra.mxu0 0.0
    %1161 = vmatprep.subr.mxu0 0.0
    %1162 = vmatpush1.xpose.msra.mxu0 0.0
    %1163 = vmatprep.subr.mxu0 0.0
    %1164 = vmatpush1.xpose.msra.mxu0 0.0
    %1165 = vmatprep.subr.mxu0 0.0
    %1166 = vmatpush1.xpose.msra.mxu0 0.0
    %1167 = vmatprep.subr.mxu0 0.0
    %1168 = vmatpush1.xpose.msra.mxu0 0.0
    %1169 = vmatprep.subr.mxu0 0.0
    %1170 = vmatpush1.xpose.msra.mxu0 0.0
    %1171 = vmatprep.subr.mxu0 0.0
    %1172 = vmatpush1.xpose.msra.mxu0 0.0
    %1173 = vmatprep.subr.mxu0 0.0
    %1174 = vmatpush1.xpose.msra.mxu0 0.0
    %1175 = vmatprep.subr.mxu0 0.0
    %1176 = vmatpush1.xpose.msra.mxu0 0.0
    %1177 = vmatprep.subr.mxu0 0.0
    %1178 = vmatpush1.xpose.msra.mxu0 0.0
    %1179 = vmatprep.subr.mxu0 0.0
    %1180 = vmatpush1.xpose.msra.mxu0 0.0
    %1181 = vmatprep.subr.mxu0 0.0
    %1182 = vmatpush1.xpose.msra.mxu0 0.0
    %1183 = vmatprep.subr.mxu0 0.0
    %1184 = vmatpush1.xpose.msra.mxu0 0.0
    %1185 = vmatprep.subr.mxu0 0.0
    %1186 = vmatpush1.xpose.msra.mxu0 0.0
    %1187 = vmatprep.subr.mxu0 0.0
    %1188 = vmatpush1.xpose.msra.mxu0 0.0
    %1189 = vmatprep.mubr.f32.mxu0 0.0
    %1190 = vmatmul.mubr.f32.gmra.mrb[0].mxu0 %v1121
    %v1191 = vpop.f32.mrb[0].mxu0
    %v1192 = vadd.f32 0.0, %v1191
    %v1193 = vpop.f32.mrb[0].mxu0
    %1194 = vdwg.mxu0
    %1195 = vrot.lane.b32.xlu0 %v125, 104
    %v1196 = vpop.permute.xlu0 %1195
    %1197 = vrot.lane.b32.xlu0 %v125, 72
    %v1198 = vpop.permute.xlu0 %1197
    %v1199 = vsel %vm131, %v1196, 0
    %v1201 = vsel %vm131, %v1198, 0
    %1203 = vmatprep.subr.mxu0 0.0
    %1204 = vmatpush1.xpose.msra.mxu0 %v1201
    %1205 = vmatprep.subr.mxu0 0.0
    %1206 = vmatpush1.xpose.msra.mxu0 0.0
    %1207 = vmatprep.subr.mxu0 0.0
    %1208 = vmatpush1.xpose.msra.mxu0 0.0
    %1209 = vmatprep.subr.mxu0 0.0
    %1210 = vmatpush1.xpose.msra.mxu0 0.0
    %1211 = vmatprep.subr.mxu0 0.0
    %1212 = vmatpush1.xpose.msra.mxu0 0.0
    %1213 = vmatprep.subr.mxu0 0.0
    %1214 = vmatpush1.xpose.msra.mxu0 0.0
    %1215 = vmatprep.subr.mxu0 0.0
    %1216 = vmatpush1.xpose.msra.mxu0 0.0
    %1217 = vmatprep.subr.mxu0 0.0
    %1218 = vmatpush1.xpose.msra.mxu0 0.0
    %1219 = vmatprep.subr.mxu0 0.0
    %1220 = vmatpush1.xpose.msra.mxu0 0.0
    %1221 = vmatprep.subr.mxu0 0.0
    %1222 = vmatpush1.xpose.msra.mxu0 0.0
    %1223 = vmatprep.subr.mxu0 0.0
    %1224 = vmatpush1.xpose.msra.mxu0 0.0
    %1225 = vmatprep.subr.mxu0 0.0
    %1226 = vmatpush1.xpose.msra.mxu0 0.0
    %1227 = vmatprep.subr.mxu0 0.0
    %1228 = vmatpush1.xpose.msra.mxu0 0.0
    %1229 = vmatprep.subr.mxu0 0.0
    %1230 = vmatpush1.xpose.msra.mxu0 0.0
    %1231 = vmatprep.subr.mxu0 0.0
    %1232 = vmatpush1.xpose.msra.mxu0 0.0
    %1233 = vmatprep.subr.mxu0 0.0
    %1234 = vmatpush1.xpose.msra.mxu0 0.0
    %1235 = vmatprep.subr.mxu0 0.0
    %1236 = vmatpush1.xpose.msra.mxu0 0.0
    %1237 = vmatprep.subr.mxu0 0.0
    %1238 = vmatpush1.xpose.msra.mxu0 0.0
    %1239 = vmatprep.subr.mxu0 0.0
    %1240 = vmatpush1.xpose.msra.mxu0 0.0
    %1241 = vmatprep.subr.mxu0 0.0
    %1242 = vmatpush1.xpose.msra.mxu0 0.0
    %1243 = vmatprep.subr.mxu0 0.0
    %1244 = vmatpush1.xpose.msra.mxu0 0.0
    %1245 = vmatprep.subr.mxu0 0.0
    %1246 = vmatpush1.xpose.msra.mxu0 0.0
    %1247 = vmatprep.subr.mxu0 0.0
    %1248 = vmatpush1.xpose.msra.mxu0 0.0
    %1249 = vmatprep.subr.mxu0 0.0
    %1250 = vmatpush1.xpose.msra.mxu0 0.0
    %1251 = vmatprep.subr.mxu0 0.0
    %1252 = vmatpush1.xpose.msra.mxu0 0.0
    %1253 = vmatprep.subr.mxu0 0.0
    %1254 = vmatpush1.xpose.msra.mxu0 0.0
    %1255 = vmatprep.subr.mxu0 0.0
    %1256 = vmatpush1.xpose.msra.mxu0 0.0
    %1257 = vmatprep.subr.mxu0 0.0
    %1258 = vmatpush1.xpose.msra.mxu0 0.0
    %1259 = vmatprep.subr.mxu0 0.0
    %1260 = vmatpush1.xpose.msra.mxu0 0.0
    %1261 = vmatprep.subr.mxu0 0.0
    %1262 = vmatpush1.xpose.msra.mxu0 0.0
    %1263 = vmatprep.subr.mxu0 0.0
    %1264 = vmatpush1.xpose.msra.mxu0 0.0
    %1265 = vmatprep.subr.mxu0 0.0
    %1266 = vmatpush1.xpose.msra.mxu0 0.0
    %1267 = vmatprep.mubr.f32.mxu0 0.0
    %1268 = vmatmul.mubr.f32.gmra.mrb[0].mxu0 %v1199
    %v1269 = vpop.f32.mrb[0].mxu0
    %v1270 = vadd.f32 0.0, %v1269
    %v1271 = vpop.f32.mrb[0].mxu0
    %1272 = vdwg.mxu0
    %v1273 = vsel %vm131, %v1192, -inf
    %1274 = vmax.xlane.f32.xlu0 %v1273
    %v1275 = vpop.xlane.xlu0 %1274
    %v1276 = vsel %vm131, %v1270, -inf
    %1277 = vmax.xlane.f32.xlu0 %v1276
    %v1278 = vpop.xlane.xlu0 %1277
    %v1279 = vsub.f32 %v1192, %v1275
    %v1280 = vsub.f32 %v1270, %v1278
    %v1281 = vmul.f32 %v1279, 1.442695
    %v1282 = vpow.pop %v1281
    %v1283 = vmul.f32 %v1280, 1.442695
    %v1284 = vpow.pop %v1283
    %v1285 = vsel %vm131, %v1282, 0.0
    %1286 = vadd.xlane.f32.xlu0 %v1285
    %v1287 = vpop.xlane.xlu0 %1286
    %v1288 = vsel %vm131, %v1284, 0.0
    %1289 = vadd.xlane.f32.xlu0 %v1288
    %v1290 = vpop.xlane.xlu0 %1289
    %v1291 = vrcp.pop %v1287
    %v1292 = vrcp.pop %v1290
    %v1293 = vmul.f32 %v1282, %v1291
    %v1294 = vmul.f32 %v1284, %v1292
    %1295 = vrot.lane.b32.xlu0 %v120, 40
    %v1296 = vpop.permute.xlu0 %1295
    %v1299 = vsel %vm131, %v1293, 0
    %1301 = vmatprep.subr.mxu0 0.0
    %1302 = vmatpush1.msra.mxu0 %v1296
    %1303 = vmatprep.subr.mxu0 0.0
    %1304 = vmatpush1.msra.mxu0 0.0
    %1305 = vmatprep.subr.mxu0 0.0
    %1306 = vmatpush1.msra.mxu0 0.0
    %1307 = vmatprep.subr.mxu0 0.0
    %1308 = vmatpush1.msra.mxu0 0.0
    %1309 = vmatprep.subr.mxu0 0.0
    %1310 = vmatpush1.msra.mxu0 0.0
    %1311 = vmatprep.subr.mxu0 0.0
    %1312 = vmatpush1.msra.mxu0 0.0
    %1313 = vmatprep.subr.mxu0 0.0
    %1314 = vmatpush1.msra.mxu0 0.0
    %1315 = vmatprep.subr.mxu0 0.0
    %1316 = vmatpush1.msra.mxu0 0.0
    %1317 = vmatprep.subr.mxu0 0.0
    %1318 = vmatpush1.msra.mxu0 0.0
    %1319 = vmatprep.subr.mxu0 0.0
    %1320 = vmatpush1.msra.mxu0 0.0
    %1321 = vmatprep.subr.mxu0 0.0
    %1322 = vmatpush1.msra.mxu0 0.0
    %1323 = vmatprep.subr.mxu0 0.0
    %1324 = vmatpush1.msra.mxu0 0.0
    %1325 = vmatprep.subr.mxu0 0.0
    %1326 = vmatpush1.msra.mxu0 0.0
    %1327 = vmatprep.subr.mxu0 0.0
    %1328 = vmatpush1.msra.mxu0 0.0
    %1329 = vmatprep.subr.mxu0 0.0
    %1330 = vmatpush1.msra.mxu0 0.0
    %1331 = vmatprep.subr.mxu0 0.0
    %1332 = vmatpush1.msra.mxu0 0.0
    %1333 = vmatprep.subr.mxu0 0.0
    %1334 = vmatpush1.msra.mxu0 0.0
    %1335 = vmatprep.subr.mxu0 0.0
    %1336 = vmatpush1.msra.mxu0 0.0
    %1337 = vmatprep.subr.mxu0 0.0
    %1338 = vmatpush1.msra.mxu0 0.0
    %1339 = vmatprep.subr.mxu0 0.0
    %1340 = vmatpush1.msra.mxu0 0.0
    %1341 = vmatprep.subr.mxu0 0.0
    %1342 = vmatpush1.msra.mxu0 0.0
    %1343 = vmatprep.subr.mxu0 0.0
    %1344 = vmatpush1.msra.mxu0 0.0
    %1345 = vmatprep.subr.mxu0 0.0
    %1346 = vmatpush1.msra.mxu0 0.0
    %1347 = vmatprep.subr.mxu0 0.0
    %1348 = vmatpush1.msra.mxu0 0.0
    %1349 = vmatprep.subr.mxu0 0.0
    %1350 = vmatpush1.msra.mxu0 0.0
    %1351 = vmatprep.subr.mxu0 0.0
    %1352 = vmatpush1.msra.mxu0 0.0
    %1353 = vmatprep.subr.mxu0 0.0
    %1354 = vmatpush1.msra.mxu0 0.0
    %1355 = vmatprep.subr.mxu0 0.0
    %1356 = vmatpush1.msra.mxu0 0.0
    %1357 = vmatprep.subr.mxu0 0.0
    %1358 = vmatpush1.msra.mxu0 0.0
    %1359 = vmatprep.subr.mxu0 0.0
    %1360 = vmatpush1.msra.mxu0 0.0
    %1361 = vmatprep.subr.mxu0 0.0
    %1362 = vmatpush1.msra.mxu0 0.0
    %1363 = vmatprep.subr.mxu0 0.0
    %1364 = vmatpush1.msra.mxu0 0.0
    %1365 = vmatprep.mubr.f32.mxu0 0.0
    %1366 = vmatmul.mubr.f32.gmra.mrb[0].mxu0 %v1299
    %v1367 = vpop.f32.mrb[0].mxu0
    %v1368 = vadd.f32 0.0, %v1367
    %v1369 = vpop.f32.mrb[0].mxu0
    %1370 = vdwg.mxu0
    %1371 = vrot.lane.b32.xlu0 %v125, 40
    %v1372 = vpop.permute.xlu0 %1371
    %v1375 = vsel %vm131, %v1294, 0
    %1377 = vmatprep.subr.mxu0 0.0
    %1378 = vmatpush1.msra.mxu0 %v1372
    %1379 = vmatprep.subr.mxu0 0.0
    %1380 = vmatpush1.msra.mxu0 0.0
    %1381 = vmatprep.subr.mxu0 0.0
    %1382 = vmatpush1.msra.mxu0 0.0
    %1383 = vmatprep.subr.mxu0 0.0
    %1384 = vmatpush1.msra.mxu0 0.0
    %1385 = vmatprep.subr.mxu0 0.0
    %1386 = vmatpush1.msra.mxu0 0.0
    %1387 = vmatprep.subr.mxu0 0.0
    %1388 = vmatpush1.msra.mxu0 0.0
    %1389 = vmatprep.subr.mxu0 0.0
    %1390 = vmatpush1.msra.mxu0 0.0
    %1391 = vmatprep.subr.mxu0 0.0
    %1392 = vmatpush1.msra.mxu0 0.0
    %1393 = vmatprep.subr.mxu0 0.0
    %1394 = vmatpush1.msra.mxu0 0.0
    %1395 = vmatprep.subr.mxu0 0.0
    %1396 = vmatpush1.msra.mxu0 0.0
    %1397 = vmatprep.subr.mxu0 0.0
    %1398 = vmatpush1.msra.mxu0 0.0
    %1399 = vmatprep.subr.mxu0 0.0
    %1400 = vmatpush1.msra.mxu0 0.0
    %1401 = vmatprep.subr.mxu0 0.0
    %1402 = vmatpush1.msra.mxu0 0.0
    %1403 = vmatprep.subr.mxu0 0.0
    %1404 = vmatpush1.msra.mxu0 0.0
    %1405 = vmatprep.subr.mxu0 0.0
    %1406 = vmatpush1.msra.mxu0 0.0
    %1407 = vmatprep.subr.mxu0 0.0
    %1408 = vmatpush1.msra.mxu0 0.0
    %1409 = vmatprep.subr.mxu0 0.0
    %1410 = vmatpush1.msra.mxu0 0.0
    %1411 = vmatprep.subr.mxu0 0.0
    %1412 = vmatpush1.msra.mxu0 0.0
    %1413 = vmatprep.subr.mxu0 0.0
    %1414 = vmatpush1.msra.mxu0 0.0
    %1415 = vmatprep.subr.mxu0 0.0
    %1416 = vmatpush1.msra.mxu0 0.0
    %1417 = vmatprep.subr.mxu0 0.0
    %1418 = vmatpush1.msra.mxu0 0.0
    %1419 = vmatprep.subr.mxu0 0.0
    %1420 = vmatpush1.msra.mxu0 0.0
    %1421 = vmatprep.subr.mxu0 0.0
    %1422 = vmatpush1.msra.mxu0 0.0
    %1423 = vmatprep.subr.mxu0 0.0
    %1424 = vmatpush1.msra.mxu0 0.0
    %1425 = vmatprep.subr.mxu0 0.0
    %1426 = vmatpush1.msra.mxu0 0.0
    %1427 = vmatprep.subr.mxu0 0.0
    %1428 = vmatpush1.msra.mxu0 0.0
    %1429 = vmatprep.subr.mxu0 0.0
    %1430 = vmatpush1.msra.mxu0 0.0
    %1431 = vmatprep.subr.mxu0 0.0
    %1432 = vmatpush1.msra.mxu0 0.0
    %1433 = vmatprep.subr.mxu0 0.0
    %1434 = vmatpush1.msra.mxu0 0.0
    %1435 = vmatprep.subr.mxu0 0.0
    %1436 = vmatpush1.msra.mxu0 0.0
    %1437 = vmatprep.subr.mxu0 0.0
    %1438 = vmatpush1.msra.mxu0 0.0
    %1439 = vmatprep.subr.mxu0 0.0
    %1440 = vmatpush1.msra.mxu0 0.0
    %1441 = vmatprep.mubr.f32.mxu0 0.0
    %1442 = vmatmul.mubr.f32.gmra.mrb[0].mxu0 %v1375
    %v1443 = vpop.f32.mrb[0].mxu0
    %v1444 = vadd.f32 0.0, %v1443
    %v1445 = vpop.f32.mrb[0].mxu0
    %1446 = vdwg.mxu0
    %1449 = vrot.lane.b32.xlu0 %v708, 8
    %v1450 = vpop.permute.xlu0 %1449
    %1451 = vrot.lane.b32.xlu0 %v784, 8
    %v1452 = vpop.permute.xlu0 %1451
    %1457 = vrot.lane.b32.xlu0 %v1038, 16
    %v1458 = vpop.permute.xlu0 %1457
    %1459 = vrot.lane.b32.xlu0 %v1114, 16
    %v1460 = vpop.permute.xlu0 %1459
    %1465 = vrot.lane.b32.xlu0 %v1368, 24
    %v1466 = vpop.permute.xlu0 %1465
    %1467 = vrot.lane.b32.xlu0 %v1444, 24
    %v1468 = vpop.permute.xlu0 %1467
    %v1471 = vsel %vm131, %v378, %v1450
    %v1472 = vsel %vm131, %v454, %v1452
    %vm1473 = vcmask 130048
    %v1474 = vsel %vm1473, %v1471, %v1458
    %v1475 = vsel %vm1473, %v1472, %v1460
    %vm1476 = vcmask 195584
    %v1477 = vsel %vm1476, %v1474, %v1466
    %v1478 = vsel %vm1476, %v1475, %v1468
    %v1479 = vld [vmem:[%s2] sm:$0xff]
    %v1480 = vld [vmem:[%s2 + $0x8] sm:$0xff]
    %v1481 = vld [vmem:[%s2 + $0x10] sm:$0xff]
    %v1482 = vld [vmem:[%s2 + $0x18] sm:$0xff]
    %v1484 = vlaneseq
    %v1485 = vshrl.u32 %v1484, 7
    %v1486 = vsub.s32 0, %v1485
    %v1487 = vrot.slane %v38, %v1486
    %v1490 = vsel %vm46, %v1477, 0
    %v1493 = vsel %vm46, %v1478, 0
    %1495 = vmatprep.subr.mxu0 0.0
    %1496 = vmatpush1.msra.mxu0 %v1479
    %1497 = vmatprep.subr.mxu0 0.0
    %1498 = vmatpush1.msra.mxu0 %v1480
    %1499 = vmatprep.subr.mxu0 0.0
    %1500 = vmatpush1.msra.mxu0 %v1481
    %1501 = vmatprep.subr.mxu0 0.0
    %1502 = vmatpush1.msra.mxu0 %v1482
    %1503 = vmatprep.subr.mxu0 0.0
    %1504 = vmatpush1.msra.mxu0 0.0
    %1505 = vmatprep.subr.mxu0 0.0
    %1506 = vmatpush1.msra.mxu0 0.0
    %1507 = vmatprep.subr.mxu0 0.0
    %1508 = vmatpush1.msra.mxu0 0.0
    %1509 = vmatprep.subr.mxu0 0.0
    %1510 = vmatpush1.msra.mxu0 0.0
    %1511 = vmatprep.subr.mxu0 0.0
    %1512 = vmatpush1.msra.mxu0 0.0
    %1513 = vmatprep.subr.mxu0 0.0
    %1514 = vmatpush1.msra.mxu0 0.0
    %1515 = vmatprep.subr.mxu0 0.0
    %1516 = vmatpush1.msra.mxu0 0.0
    %1517 = vmatprep.subr.mxu0 0.0
    %1518 = vmatpush1.msra.mxu0 0.0
    %1519 = vmatprep.subr.mxu0 0.0
    %1520 = vmatpush1.msra.mxu0 0.0
    %1521 = vmatprep.subr.mxu0 0.0
    %1522 = vmatpush1.msra.mxu0 0.0
    %1523 = vmatprep.subr.mxu0 0.0
    %1524 = vmatpush1.msra.mxu0 0.0
    %1525 = vmatprep.subr.mxu0 0.0
    %1526 = vmatpush1.msra.mxu0 0.0
    %1527 = vmatprep.subr.mxu0 0.0
    %1528 = vmatpush1.msra.mxu0 0.0
    %1529 = vmatprep.subr.mxu0 0.0
    %1530 = vmatpush1.msra.mxu0 0.0
    %1531 = vmatprep.subr.mxu0 0.0
    %1532 = vmatpush1.msra.mxu0 0.0
    %1533 = vmatprep.subr.mxu0 0.0
    %1534 = vmatpush1.msra.mxu0 0.0
    %1535 = vmatprep.subr.mxu0 0.0
    %1536 = vmatpush1.msra.mxu0 0.0
    %1537 = vmatprep.subr.mxu0 0.0
    %1538 = vmatpush1.msra.mxu0 0.0
    %1539 = vmatprep.subr.mxu0 0.0
    %1540 = vmatpush1.msra.mxu0 0.0
    %1541 = vmatprep.subr.mxu0 0.0
    %1542 = vmatpush1.msra.mxu0 0.0
    %1543 = vmatprep.subr.mxu0 0.0
    %1544 = vmatpush1.msra.mxu0 0.0
    %1545 = vmatprep.subr.mxu0 0.0
    %1546 = vmatpush1.msra.mxu0 0.0
    %1547 = vmatprep.subr.mxu0 0.0
    %1548 = vmatpush1.msra.mxu0 0.0
    %1549 = vmatprep.subr.mxu0 0.0
    %1550 = vmatpush1.msra.mxu0 0.0
    %1551 = vmatprep.subr.mxu0 0.0
    %1552 = vmatpush1.msra.mxu0 0.0
    %1553 = vmatprep.subr.mxu0 0.0
    %1554 = vmatpush1.msra.mxu0 0.0
    %1555 = vmatprep.subr.mxu0 0.0
    %1556 = vmatpush1.msra.mxu0 0.0
    %1557 = vmatprep.subr.mxu0 0.0
    %1558 = vmatpush1.msra.mxu0 0.0
    %1559 = vmatprep.mubr.f32.mxu0 0.0
    %1560 = vmatmul.mubr.f32.gmra.mrb[0].mxu0 %v1490
    %v1561 = vpop.f32.mrb[0].mxu0
    %v1562 = vadd.f32 %v1487, %v1561
    %v1563 = vpop.f32.mrb[0].mxu0
    %1564 = vmatprep.mubr.f32.mxu0 0.0
    %1565 = vmatmul.mubr.f32.gmra.mrb[0].mxu0 %v1493
    %v1566 = vpop.f32.mrb[0].mxu0
    %v1567 = vadd.f32 %v1487, %v1566
    %v1568 = vpop.f32.mrb[0].mxu0
    %1569 = vdwg.mxu0
    %v1570 = vadd.f32 %v40, %v1562
    %v1571 = vadd.f32 %v41, %v1567
    %v1572 = vsel %vm46, %v1570, 0.0
    %v1573 = vrot.slane %v1572, 4
    %v1574 = vadd.f32 %v1572, %v1573
    %v1575 = vrot.slane %v1574, 2
    %v1576 = vadd.f32 %v1574, %v1575
    %v1577 = vrot.slane %v1576, 1
    %v1578 = vadd.f32 %v1576, %v1577
    %v1579 = vsel %vm46, %v1571, 0.0
    %v1580 = vrot.slane %v1579, 4
    %v1581 = vadd.f32 %v1579, %v1580
    %v1582 = vrot.slane %v1581, 2
    %v1583 = vadd.f32 %v1581, %v1582
    %v1584 = vrot.slane %v1583, 1
    %v1585 = vadd.f32 %v1583, %v1584
    %v1586 = vrcp.pop 8.0
    %v1587 = vmul.f32 %v1578, %v1586
    %v1588 = vmul.f32 %v1585, %v1586
    %v1589 = vsub.f32 %v1570, %v1587
    %v1590 = vsub.f32 %v1571, %v1588
    %v1591 = vmul.f32 %v1589, %v1589
    %v1592 = vmul.f32 %v1590, %v1590
    %v1593 = vsel %vm46, %v1591, 0.0
    %v1594 = vrot.slane %v1593, 4
    %v1595 = vadd.f32 %v1593, %v1594
    %v1596 = vrot.slane %v1595, 2
    %v1597 = vadd.f32 %v1595, %v1596
    %v1598 = vrot.slane %v1597, 1
    %v1599 = vadd.f32 %v1597, %v1598
    %v1600 = vsel %vm46, %v1592, 0.0
    %v1601 = vrot.slane %v1600, 4
    %v1602 = vadd.f32 %v1600, %v1601
    %v1603 = vrot.slane %v1602, 2
    %v1604 = vadd.f32 %v1602, %v1603
    %v1605 = vrot.slane %v1604, 1
    %v1606 = vadd.f32 %v1604, %v1605
    %v1607 = vmul.f32 %v1599, %v1586
    %v1608 = vmul.f32 %v1606, %v1586
    %v1609 = vadd.f32 %v1607, 1e-05
    %v1610 = vadd.f32 %v1608, 1e-05
    %v1611 = vrsqrt.pop %v1609
    %v1612 = vrsqrt.pop %v1610
    %v1613 = vmul.f32 %v1589, %v1611
    %v1614 = vmul.f32 %v1590, %v1612
    %1615 = vrot.lane.b32.xlu0 %v1487, 96
    %v1616 = vpop.permute.xlu0 %1615
    %v1618 = vmul.f32 %v1613, %v1616
    %v1619 = vmul.f32 %v1614, %v1616
    %1620 = vrot.lane.b32.xlu0 %v1487, 64
    %v1621 = vpop.permute.xlu0 %1620
    %v1623 = vadd.f32 %v1618, %v1621
    %v1624 = vadd.f32 %v1619, %v1621
    %v1625 = vld [vmem:[%s3] sm:$0xff]
    %v1626 = vld [vmem:[%s3 + $0x8] sm:$0xff]
    %v1627 = vld [vmem:[%s3 + $0x10] sm:$0xff]
    %v1628 = vld [vmem:[%s3 + $0x18] sm:$0xff]
    %v1630 = vlaneseq
    %v1631 = vshrl.u32 %v1630, 7
    %v1632 = vsub.s32 0, %v1631
    %v1633 = vrot.slane %v39, %v1632
    %1634 = vrot.lane.b32.xlu0 %v1633, 64
    %v1635 = vpop.permute.xlu0 %1634
    %v1638 = vsel %vm46, %v1623, 0
    %v1641 = vsel %vm46, %v1624, 0
    %1643 = vmatprep.subr.mxu0 0.0
    %1644 = vmatpush1.msra.mxu0 %v1625
    %1645 = vmatprep.subr.mxu0 0.0
    %1646 = vmatpush1.msra.mxu0 %v1626
    %1647 = vmatprep.subr.mxu0 0.0
    %1648 = vmatpush1.msra.mxu0 %v1627
    %1649 = vmatprep.subr.mxu0 0.0
    %1650 = vmatpush1.msra.mxu0 %v1628
    %1651 = vmatprep.subr.mxu0 0.0
    %1652 = vmatpush1.msra.mxu0 0.0
    %1653 = vmatprep.subr.mxu0 0.0
    %1654 = vmatpush1.msra.mxu0 0.0
    %1655 = vmatprep.subr.mxu0 0.0
    %1656 = vmatpush1.msra.mxu0 0.0
    %1657 = vmatprep.subr.mxu0 0.0
    %1658 = vmatpush1.msra.mxu0 0.0
    %1659 = vmatprep.subr.mxu0 0.0
    %1660 = vmatpush1.msra.mxu0 0.0
    %1661 = vmatprep.subr.mxu0 0.0
    %1662 = vmatpush1.msra.mxu0 0.0
    %1663 = vmatprep.subr.mxu0 0.0
    %1664 = vmatpush1.msra.mxu0 0.0
    %1665 = vmatprep.subr.mxu0 0.0
    %1666 = vmatpush1.msra.mxu0 0.0
    %1667 = vmatprep.subr.mxu0 0.0
    %1668 = vmatpush1.msra.mxu0 0.0
    %1669 = vmatprep.subr.mxu0 0.0
    %1670 = vmatpush1.msra.mxu0 0.0
    %1671 = vmatprep.subr.mxu0 0.0
    %1672 = vmatpush1.msra.mxu0 0.0
    %1673 = vmatprep.subr.mxu0 0.0
    %1674 = vmatpush1.msra.mxu0 0.0
    %1675 = vmatprep.subr.mxu0 0.0
    %1676 = vmatpush1.msra.mxu0 0.0
    %1677 = vmatprep.subr.mxu0 0.0
    %1678 = vmatpush1.msra.mxu0 0.0
    %1679 = vmatprep.subr.mxu0 0.0
    %1680 = vmatpush1.msra.mxu0 0.0
    %1681 = vmatprep.subr.mxu0 0.0
    %1682 = vmatpush1.msra.mxu0 0.0
    %1683 = vmatprep.subr.mxu0 0.0
    %1684 = vmatpush1.msra.mxu0 0.0
    %1685 = vmatprep.subr.mxu0 0.0
    %1686 = vmatpush1.msra.mxu0 0.0
    %1687 = vmatprep.subr.mxu0 0.0
    %1688 = vmatpush1.msra.mxu0 0.0
    %1689 = vmatprep.subr.mxu0 0.0
    %1690 = vmatpush1.msra.mxu0 0.0
    %1691 = vmatprep.subr.mxu0 0.0
    %1692 = vmatpush1.msra.mxu0 0.0
    %1693 = vmatprep.subr.mxu0 0.0
    %1694 = vmatpush1.msra.mxu0 0.0
    %1695 = vmatprep.subr.mxu0 0.0
    %1696 = vmatpush1.msra.mxu0 0.0
    %1697 = vmatprep.subr.mxu0 0.0
    %1698 = vmatpush1.msra.mxu0 0.0
    %1699 = vmatprep.subr.mxu0 0.0
    %1700 = vmatpush1.msra.mxu0 0.0
    %1701 = vmatprep.subr.mxu0 0.0
    %1702 = vmatpush1.msra.mxu0 0.0
    %1703 = vmatprep.subr.mxu0 0.0
    %1704 = vmatpush1.msra.mxu0 0.0
    %1705 = vmatprep.subr.mxu0 0.0
    %1706 = vmatpush1.msra.mxu0 0.0
    %1707 = vmatprep.mubr.f32.mxu0 0.0
    %1708 = vmatmul.mubr.f32.gmra.mrb[0].mxu0 %v1638
    %v1709 = vpop.f32.mrb[0].mxu0
    %v1710 = vadd.f32 %v1635, %v1709
    %v1711 = vpop.f32.mrb[0].mxu0
    %1712 = vmatprep.mubr.f32.mxu0 0.0
    %1713 = vmatmul.mubr.f32.gmra.mrb[0].mxu0 %v1641
    %v1714 = vpop.f32.mrb[0].mxu0
    %v1715 = vadd.f32 %v1635, %v1714
    %v1716 = vpop.f32.mrb[0].mxu0
    %1717 = vdwg.mxu0
    %v1718 = vmax.f32 %v1710, 0.0
    %v1719 = vmax.f32 %v1715, 0.0
    %v1720 = vld [vmem:[%s4] sm:$0xff]
    %v1721 = vld [vmem:[%s4 + $0x8] sm:$0xff]
    %v1722 = vld [vmem:[%s4 + $0x10] sm:$0xff]
    %v1723 = vld [vmem:[%s4 + $0x18] sm:$0xff]
    %v1724 = vld [vmem:[%s4 + $0x20] sm:$0xff]
    %v1725 = vld [vmem:[%s4 + $0x28] sm:$0xff]
    %v1726 = vld [vmem:[%s4 + $0x30] sm:$0xff]
    %v1727 = vld [vmem:[%s4 + $0x38] sm:$0xff]
    %1728 = vrot.lane.b32.xlu0 %v1633, 96
    %v1729 = vpop.permute.xlu0 %1728
    %vm1731 = vcmask 523264
    %v1733 = vsel %vm1731, %v1718, 0
    %v1736 = vsel %vm1731, %v1719, 0
    %1738 = vmatprep.subr.mxu0 0.0
    %1739 = vmatpush1.msra.mxu0 %v1720
    %1740 = vmatprep.subr.mxu0 0.0
    %1741 = vmatpush1.msra.mxu0 %v1721
    %1742 = vmatprep.subr.mxu0 0.0
    %1743 = vmatpush1.msra.mxu0 %v1722
    %1744 = vmatprep.subr.mxu0 0.0
    %1745 = vmatpush1.msra.mxu0 %v1723
    %1746 = vmatprep.subr.mxu0 0.0
    %1747 = vmatpush1.msra.mxu0 %v1724
    %1748 = vmatprep.subr.mxu0 0.0
    %1749 = vmatpush1.msra.mxu0 %v1725
    %1750 = vmatprep.subr.mxu0 0.0
    %1751 = vmatpush1.msra.mxu0 %v1726
    %1752 = vmatprep.subr.mxu0 0.0
    %1753 = vmatpush1.msra.mxu0 %v1727
    %1754 = vmatprep.subr.mxu0 0.0
    %1755 = vmatpush1.msra.mxu0 0.0
    %1756 = vmatprep.subr.mxu0 0.0
    %1757 = vmatpush1.msra.mxu0 0.0
    %1758 = vmatprep.subr.mxu0 0.0
    %1759 = vmatpush1.msra.mxu0 0.0
    %1760 = vmatprep.subr.mxu0 0.0
    %1761 = vmatpush1.msra.mxu0 0.0
    %1762 = vmatprep.subr.mxu0 0.0
    %1763 = vmatpush1.msra.mxu0 0.0
    %1764 = vmatprep.subr.mxu0 0.0
    %1765 = vmatpush1.msra.mxu0 0.0
    %1766 = vmatprep.subr.mxu0 0.0
    %1767 = vmatpush1.msra.mxu0 0.0
    %1768 = vmatprep.subr.mxu0 0.0
    %1769 = vmatpush1.msra.mxu0 0.0
    %1770 = vmatprep.subr.mxu0 0.0
    %1771 = vmatpush1.msra.mxu0 0.0
    %1772 = vmatprep.subr.mxu0 0.0
    %1773 = vmatpush1.msra.mxu0 0.0
    %1774 = vmatprep.subr.mxu0 0.0
    %1775 = vmatpush1.msra.mxu0 0.0
    %1776 = vmatprep.subr.mxu0 0.0
    %1777 = vmatpush1.msra.mxu0 0.0
    %1778 = vmatprep.subr.mxu0 0.0
    %1779 = vmatpush1.msra.mxu0 0.0
    %1780 = vmatprep.subr.mxu0 0.0
    %1781 = vmatpush1.msra.mxu0 0.0
    %1782 = vmatprep.subr.mxu0 0.0
    %1783 = vmatpush1.msra.mxu0 0.0
    %1784 = vmatprep.subr.mxu0 0.0
    %1785 = vmatpush1.msra.mxu0 0.0
    %1786 = vmatprep.subr.mxu0 0.0
    %1787 = vmatpush1.msra.mxu0 0.0
    %1788 = vmatprep.subr.mxu0 0.0
    %1789 = vmatpush1.msra.mxu0 0.0
    %1790 = vmatprep.subr.mxu0 0.0
    %1791 = vmatpush1.msra.mxu0 0.0
    %1792 = vmatprep.subr.mxu0 0.0
    %1793 = vmatpush1.msra.mxu0 0.0
    %1794 = vmatprep.subr.mxu0 0.0
    %1795 = vmatpush1.msra.mxu0 0.0
    %1796 = vmatprep.subr.mxu0 0.0
    %1797 = vmatpush1.msra.mxu0 0.0
    %1798 = vmatprep.subr.mxu0 0.0
    %1799 = vmatpush1.msra.mxu0 0.0
    %1800 = vmatprep.subr.mxu0 0.0
    %1801 = vmatpush1.msra.mxu0 0.0
    %1802 = vmatprep.mubr.f32.mxu0 0.0
    %1803 = vmatmul.mubr.f32.gmra.mrb[0].mxu0 %v1733
    %v1804 = vpop.f32.mrb[0].mxu0
    %v1805 = vadd.f32 %v1729, %v1804
    %v1806 = vpop.f32.mrb[0].mxu0
    %1807 = vmatprep.mubr.f32.mxu0 0.0
    %1808 = vmatmul.mubr.f32.gmra.mrb[0].mxu0 %v1736
    %v1809 = vpop.f32.mrb[0].mxu0
    %v1810 = vadd.f32 %v1729, %v1809
    %v1811 = vpop.f32.mrb[0].mxu0
    %1812 = vdwg.mxu0
    %v1813 = vadd.f32 %v1623, %v1805
    %v1814 = vadd.f32 %v1624, %v1810
    %v1815 = vsel %vm46, %v1813, 0.0
    %v1816 = vrot.slane %v1815, 4
    %v1817 = vadd.f32 %v1815, %v1816
    %v1818 = vrot.slane %v1817, 2
    %v1819 = vadd.f32 %v1817, %v1818
    %v1820 = vrot.slane %v1819, 1
    %v1821 = vadd.f32 %v1819, %v1820
    %v1822 = vsel %vm46, %v1814, 0.0
    %v1823 = vrot.slane %v1822, 4
    %v1824 = vadd.f32 %v1822, %v1823
    %v1825 = vrot.slane %v1824, 2
    %v1826 = vadd.f32 %v1824, %v1825
    %v1827 = vrot.slane %v1826, 1
    %v1828 = vadd.f32 %v1826, %v1827
    %v1829 = vmul.f32 %v1821, %v1586
    %v1830 = vmul.f32 %v1828, %v1586
    %v1831 = vsub.f32 %v1813, %v1829
    %v1832 = vsub.f32 %v1814, %v1830
    %v1833 = vmul.f32 %v1831, %v1831
    %v1834 = vmul.f32 %v1832, %v1832
    %v1835 = vsel %vm46, %v1833, 0.0
    %v1836 = vrot.slane %v1835, 4
    %v1837 = vadd.f32 %v1835, %v1836
    %v1838 = vrot.slane %v1837, 2
    %v1839 = vadd.f32 %v1837, %v1838
    %v1840 = vrot.slane %v1839, 1
    %v1841 = vadd.f32 %v1839, %v1840
    %v1842 = vsel %vm46, %v1834, 0.0
    %v1843 = vrot.slane %v1842, 4
    %v1844 = vadd.f32 %v1842, %v1843
    %v1845 = vrot.slane %v1844, 2
    %v1846 = vadd.f32 %v1844, %v1845
    %v1847 = vrot.slane %v1846, 1
    %v1848 = vadd.f32 %v1846, %v1847
    %v1849 = vmul.f32 %v1841, %v1586
    %v1850 = vmul.f32 %v1848, %v1586
    %v1851 = vadd.f32 %v1849, 1e-05
    %v1852 = vadd.f32 %v1850, 1e-05
    %v1853 = vrsqrt.pop %v1851
    %v1854 = vrsqrt.pop %v1852
    %v1855 = vmul.f32 %v1831, %v1853
    %v1856 = vmul.f32 %v1832, %v1854
    %1857 = vrot.lane.b32.xlu0 %v1487, 32
    %v1858 = vpop.permute.xlu0 %1857
    %v1860 = vmul.f32 %v1855, %v1858
    %v1861 = vmul.f32 %v1856, %v1858
    %v1863 = vadd.f32 %v1860, %v1633
    %v1864 = vadd.f32 %v1861, %v1633
    %1865 = vst.msk [vmem:[#allocation5] sm:$0xff] %vm46, %v1863
    %1866 = vst.msk [vmem:[#allocation5 + $0x8] sm:$0xff] %vm46, %v1864
    // Predicated region
    $region30: #{tpu_custom_call.1} parent=1 // pred_check
      _
    $region31: #{tpu_custom_call.1} parent=1 // pred_check_branch
      %1868 = sbr.rel (0) target = $region33
    $region32: #{tpu_custom_call.1} parent=1 // pred_region
      %s1870 = ssub.s32 256, 256
      %1871 = vsyncadd [#allocation4], %s1870
      %s1872 = sshll.u32 [#allocation5], 4
      %s1873 = int_to_ptr.vmem [resolvable:$true] %s1872
      %1878 = dma.vmem_to_hbm [thread:$0]  %s1873, 256, %s6, [#allocation4], 128, 128, 8
    $region33: #{tpu_custom_call.1} parent=1 // pred_fallthru
      _
    // Predicated region
    $region34: #{tpu_custom_call.1} parent=1 // pred_check
      _
    $region35: #{tpu_custom_call.1} parent=1 // pred_check_branch
      %1880 = sbr.rel (0) target = $region37
    $region36: #{tpu_custom_call.1} parent=1 // pred_region
      %1881 = dma.done [#allocation4], 256
    $region37: #{tpu_custom_call.1} parent=1 // pred_fallthru
      _
    %1882 = vsyncpa [#allocation3], 1
    %1883 = vsyncpa [#allocation4], 1

</llo_original>
